<compile_context>
chip_gen: v7x
topology: tpu7x:2x2x1
jax: 0.10.0
libtpu: 0.0.40
codegen_flags: <defaults>
</compile_context>

<pallas_src>
import functools

import jax
import jax.numpy as jnp
from jax.experimental import pallas as pl
from jax.experimental.pallas import tpu as pltpu


# ----------------------------------------------------------------------------
# Fused kernel per batch tile: (embedding ∘ conv1)(k=5,p=2) -> relu
#                              -> conv2(k=3,p=1) -> relu -> conv_out(k=1)
# ----------------------------------------------------------------------------
def cnn_kernel(idx_ref, w1_ref, b1_ref, w2_ref, b2_ref, w3_ref, b3_ref,
               o_ref, pad2_ref):
    TB, L, CP = o_ref.shape            # (tile_b, L, 128) per grid step
    Lp4 = idx_ref.shape[-1]            # L + 4 (conv1 halo already in the index pad)
    V = w1_ref.shape[1]                # vocab size (fused emb+conv1 weight (5, V, 128))
    C1 = w2_ref.shape[-1]              # 128 hidden channels
    M = TB * L                         # fused matmul M dimension for this tile

    # ---- embedding + conv1 (k=5, pad=2), folded: 5 shifted one-hot MXU matmuls ----
    # Halo positions carry index == V (out of range) -> all-zero one-hot row, i.e.
    # exact zero padding of the embedded signal.
    idx = idx_ref[...].reshape(TB, Lp4)                          # lane-dense int32
    vpos = jax.lax.broadcasted_iota(jnp.int32, (TB, Lp4, V), 2)
    onehot = (vpos == idx[:, :, None]).astype(jnp.bfloat16)      # (TB, L+4, V)

    acc = jnp.zeros((M, C1), jnp.float32)
    for dk in range(5):                                          # static unroll
        lhs = onehot[:, dk:dk + L, :].reshape(M, V)
        acc = acc + jnp.dot(lhs, w1_ref[dk],
                            preferred_element_type=jnp.float32)
    h1 = jnp.maximum(acc + b1_ref[...], 0.0)                     # bias + ReLU in f32
    # TODO(synk): dropout(0.3) omitted (inference / eval semantics -> identity).

    # ---- conv2 (k=3, pad=1): bf16 zero-halo scratch, halo-only pack-aligned zeroing
    # Scratch rows: [0:2] zero | [2:L+2] ReLU'd h1 (bf16) | [L+2:L+4] zero.
    zeros2 = jnp.zeros((TB, 2, C1), pad2_ref.dtype)
    pad2_ref[:, 0:2, :] = zeros2
    pad2_ref[:, L + 2:L + 4, :] = zeros2
    pad2_ref[:, 2:L + 2, :] = h1.astype(pad2_ref.dtype).reshape(TB, L, C1)

    acc = jnp.zeros((M, C1), jnp.float32)
    for dk in range(3):                                          # static unroll
        lhs = pad2_ref[:, 1 + dk:1 + dk + L, :].reshape(M, C1)
        acc = acc + jnp.dot(lhs, w2_ref[dk],
                            preferred_element_type=jnp.float32)
    h2 = jnp.maximum(acc + b2_ref[...], 0.0)

    # ---- conv_out (k=1): classes pre-padded to 128 -> lane-dense unmasked stores ----
    logits = jnp.dot(h2.astype(jnp.bfloat16), w3_ref[...],
                     preferred_element_type=jnp.float32) + b3_ref[...]
    o_ref[...] = logits.reshape(TB, L, CP)


# ----------------------------------------------------------------------------
# Wrapper: only layout / weight plumbing in plain JAX; all math in the kernel.
# ----------------------------------------------------------------------------
@functools.partial(jax.jit, static_argnames=("tile_b",))
def cnn_forward(x_idx, emb, w1, b1, w2, b2, w3, b3, *, tile_b=None):
    B, L = x_idx.shape
    V, E = emb.shape
    C = w3.shape[-1]
    CH = w1.shape[-1]          # 128 hidden channels
    CP = 128                   # padded class dim (lane-dense output)

    if tile_b is None:
        # Largest batch tile whose fused M (= tile_b * L) stays <= ~1024 rows: big
        # enough to amortize per-step overhead, small enough to sit comfortably in
        # scoped VMEM with double buffering on v5e / v6e / v7x (64 MiB physical).
        tile_b = 1
        for d in range(1, B + 1):
            if B % d == 0 and d * L <= 1024:
                tile_b = d
    assert B % tile_b == 0, "tile_b must divide the batch size"

    # ---- weight/layout plumbing (no activation math here) ----
    # Fold the embedding into conv1: per-tap fused weight (V, 128), E-contraction in f32.
    w1f = jnp.einsum("ve,kec->kvc", emb, w1).astype(jnp.bfloat16)      # (5, V, 128)
    w2b = w2.astype(jnp.bfloat16)                                       # (3, 128, 128)
    w3p = jnp.zeros((CH, CP), jnp.float32).at[:, :C].set(w3).astype(jnp.bfloat16)
    b3p = jnp.zeros((1, CP), jnp.float32).at[:, :C].set(b3)
    # Index padding == conv1 zero padding: halo token V is out-of-vocab -> zero one-hot.
    x_pad = jnp.pad(x_idx.astype(jnp.int32), ((0, 0), (2, 2)),
                    constant_values=V).reshape(B, 1, L + 4)

    out = pl.pallas_call(
        cnn_kernel,
        out_shape=jax.ShapeDtypeStruct((B, L, CP), jnp.float32),
        grid=(B // tile_b,),
        in_specs=[
            pl.BlockSpec((tile_b, 1, L + 4), lambda i: (i, 0, 0)),  # token indices
            pl.BlockSpec((5, V, CH), lambda i: (0, 0, 0)),          # fused emb+conv1 w
            pl.BlockSpec((1, CH), lambda i: (0, 0)),                # conv1 bias (f32)
            pl.BlockSpec((3, CH, CH), lambda i: (0, 0, 0)),         # conv2 weight
            pl.BlockSpec((1, CH), lambda i: (0, 0)),                # conv2 bias (f32)
            pl.BlockSpec((CH, CP), lambda i: (0, 0)),               # conv_out w (padded)
            pl.BlockSpec((1, CP), lambda i: (0, 0)),                # conv_out b (padded)
        ],
        out_specs=pl.BlockSpec((tile_b, L, CP), lambda i: (i, 0, 0)),
        scratch_shapes=[
            pltpu.VMEM((tile_b, L + 4, CH), jnp.bfloat16),          # conv2 zero-halo buf
        ],
        compiler_params=pltpu.CompilerParams(
            dimension_semantics=("parallel",),          # megacore sharding on v7x
            vmem_limit_bytes=32 * 1024 * 1024),
    )(x_pad, w1f, b1, w2b, b2, w3p, b3p)

    return out[:, :, :C]


# ----------------------------------------------------------------------------
# Pure-JAX f32 reference (same math, no Pallas) for a sanity check.
# ----------------------------------------------------------------------------
def cnn_forward_ref(x_idx, emb, w1, b1, w2, b2, w3, b3):
    embedded = jnp.take(emb, x_idx, axis=0)                 # (B, L, E)
    B, L, E = embedded.shape

    def conv1d(xp, w, b, pad):
        # xp: (B, L, Cin), w: (K, Cin, Cout)
        xpad = jnp.pad(xp, ((0, 0), (pad, pad), (0, 0)))
        K = w.shape[0]
        out = jnp.zeros((B, L, w.shape[-1]), jnp.float32)
        for dk in range(K):
            out = out + jnp.einsum("blc,cd->bld", xpad[:, dk:dk + L, :], w[dk])
        return out + b[None]

    h1 = jax.nn.relu(conv1d(embedded, w1, b1, pad=2))
    h2 = jax.nn.relu(conv1d(h1, w2, b2, pad=1))
    return conv1d(h2, w3[None], b3, pad=0)


# ----------------------------------------------------------------------------
# Deterministic parameter init + run
# ----------------------------------------------------------------------------
def make_params(key, vocab_size, embedding_dim, num_classes):
    k_emb, k1, k2, k3, kb1, kb2, kb3 = jax.random.split(key, 7)
    emb = 0.5 * jax.random.normal(k_emb, (vocab_size, embedding_dim), jnp.float32)
    emb = emb.at[0].set(0.0)                                # padding_idx=0

    def conv_init(k, kk, cin, cout):
        bound = 1.0 / jnp.sqrt(cin * kk)
        return jax.random.uniform(k, (kk, cin, cout), jnp.float32, -bound, bound)

    w1 = conv_init(k1, 5, embedding_dim, 128)               # (5, E, 128)
    b1 = 0.02 * jax.random.normal(kb1, (1, 128), jnp.float32)
    w2 = conv_init(k2, 3, 128, 128)                         # (3, 128, 128)
    b2 = 0.02 * jax.random.normal(kb2, (1, 128), jnp.float32)
    w3 = conv_init(k3, 1, 128, num_classes)[0]              # (128, C)
    b3 = 0.02 * jax.random.normal(kb3, (1, num_classes), jnp.float32)
    return emb, w1, b1, w2, b2, w3, b3


if __name__ == "__main__":
    vocab_size, embedding_dim, num_classes, max_len = 40, 32, 5, 64
    batch = 4

    key = jax.random.PRNGKey(0)
    k_params, k_x = jax.random.split(key)
    params = make_params(k_params, vocab_size, embedding_dim, num_classes)

    x = jax.random.randint(k_x, (batch, max_len), 0, vocab_size, dtype=jnp.int32)

    # tile_b=2 -> grid=(2,): exercises the tiled / pipelined path even at demo scale.
    logits = jax.block_until_ready(cnn_forward(x, *params, tile_b=2))
    ref = cnn_forward_ref(x, *params)

    assert logits.shape == (batch, max_len, num_classes)
    # bf16 MXU operands with f32 accumulation -> loosened tolerance vs f32 reference.
    max_err = float(jnp.max(jnp.abs(logits - ref)))
    assert jnp.allclose(logits, ref, atol=1e-2, rtol=1e-2), (
        f"mismatch vs JAX reference, max abs diff = {max_err}")

    print("KERNEL_OK")
</pallas_src>

<mosaic_0001>
module attributes {stable_mosaic.version = 11 : i64} {
  func.func @cnn_kernel(%arg0: i32, %arg1: memref<2x1x68xi32, #tpu.memory_space<vmem>>, %arg2: memref<5x40x128xbf16, #tpu.memory_space<vmem>>, %arg3: memref<1x128xf32, #tpu.memory_space<vmem>>, %arg4: memref<3x128x128xbf16, #tpu.memory_space<vmem>>, %arg5: memref<1x128xf32, #tpu.memory_space<vmem>>, %arg6: memref<128x128xbf16, #tpu.memory_space<vmem>>, %arg7: memref<1x128xf32, #tpu.memory_space<vmem>>, %arg8: memref<2x64x128xf32, #tpu.memory_space<vmem>>, %arg9: memref<2x68x128xbf16, #tpu.memory_space<vmem>>) attributes {dimension_semantics = [#tpu.dimension_semantics<parallel>], iteration_bounds = array<i64: 2>, scalar_prefetch = 0 : i64, scratch_operands = 1 : i64, tpu.core_type = #tpu.core_type<tc>, window_params = [{transform_indices = @transform_0, window_bounds = array<i64: 2, 1, 68>}, {pipeline_mode = #tpu.pipeline_mode<synchronous>, transform_indices = @transform_1, window_bounds = array<i64: 5, 40, 128>}, {pipeline_mode = #tpu.pipeline_mode<synchronous>, transform_indices = @transform_2, window_bounds = array<i64: 1, 128>}, {pipeline_mode = #tpu.pipeline_mode<synchronous>, transform_indices = @transform_3, window_bounds = array<i64: 3, 128, 128>}, {pipeline_mode = #tpu.pipeline_mode<synchronous>, transform_indices = @transform_4, window_bounds = array<i64: 1, 128>}, {pipeline_mode = #tpu.pipeline_mode<synchronous>, transform_indices = @transform_5, window_bounds = array<i64: 128, 128>}, {pipeline_mode = #tpu.pipeline_mode<synchronous>, transform_indices = @transform_6, window_bounds = array<i64: 1, 128>}, {transform_indices = @transform_7, window_bounds = array<i64: 2, 64, 128>}]} {
    %c0 = arith.constant 0 : index
    %c0_0 = arith.constant 0 : index
    %c0_1 = arith.constant 0 : index
    %0 = vector.load %arg1[%c0, %c0_0, %c0_1] : memref<2x1x68xi32, #tpu.memory_space<vmem>>, vector<2x1x68xi32>
    %1 = vector.shape_cast %0 : vector<2x1x68xi32> to vector<2x68xi32>
    %2 = tpu.iota {dimensions = array<i32: 2>} : vector<2x68x40xi32>
    %3 = vector.shape_cast %1 : vector<2x68xi32> to vector<2x68x1xi32>
    %4 = vector.broadcast %3 : vector<2x68x1xi32> to vector<2x68x40xi32>
    %5 = arith.cmpi eq, %2, %4 : vector<2x68x40xi32>
    %6 = arith.extui %5 : vector<2x68x40xi1> to vector<2x68x40xi32>
    %7 = arith.sitofp %6 : vector<2x68x40xi32> to vector<2x68x40xf32>
    %8 = arith.truncf %7 : vector<2x68x40xf32> to vector<2x68x40xbf16>
    %cst = arith.constant 0.000000e+00 : f32
    %9 = vector.broadcast %cst : f32 to vector<128x128xf32>
    %10 = vector.extract_strided_slice %8 {offsets = [0, 0, 0], sizes = [2, 64, 40], strides = [1, 1, 1]} : vector<2x68x40xbf16> to vector<2x64x40xbf16>
    %11 = vector.shape_cast %10 : vector<2x64x40xbf16> to vector<128x40xbf16>
    %c0_2 = arith.constant 0 : index
    %c0_3 = arith.constant 0 : index
    %c0_4 = arith.constant 0 : index
    %12 = vector.load %arg2[%c0_2, %c0_3, %c0_4] : memref<5x40x128xbf16, #tpu.memory_space<vmem>>, vector<1x40x128xbf16>
    %13 = vector.shape_cast %12 : vector<1x40x128xbf16> to vector<40x128xbf16>
    %cst_5 = arith.constant dense<0.000000e+00> : vector<128x128xf32>
    %14 = tpu.matmul %11, %13, %cst_5 {dimension_numbers = #tpu.dot_dimension_numbers<[1], [0], [0], [1], [0, 0, 1, 1], [], []>} : vector<128x40xbf16>, vector<40x128xbf16>, vector<128x128xf32> -> vector<128x128xf32>
    %15 = arith.addf %9, %14 : vector<128x128xf32>
    %16 = vector.extract_strided_slice %8 {offsets = [0, 1, 0], sizes = [2, 64, 40], strides = [1, 1, 1]} : vector<2x68x40xbf16> to vector<2x64x40xbf16>
    %17 = vector.shape_cast %16 : vector<2x64x40xbf16> to vector<128x40xbf16>
    %c1 = arith.constant 1 : index
    %c0_6 = arith.constant 0 : index
    %c0_7 = arith.constant 0 : index
    %18 = vector.load %arg2[%c1, %c0_6, %c0_7] : memref<5x40x128xbf16, #tpu.memory_space<vmem>>, vector<1x40x128xbf16>
    %19 = vector.shape_cast %18 : vector<1x40x128xbf16> to vector<40x128xbf16>
    %cst_8 = arith.constant dense<0.000000e+00> : vector<128x128xf32>
    %20 = tpu.matmul %17, %19, %cst_8 {dimension_numbers = #tpu.dot_dimension_numbers<[1], [0], [0], [1], [0, 0, 1, 1], [], []>} : vector<128x40xbf16>, vector<40x128xbf16>, vector<128x128xf32> -> vector<128x128xf32>
    %21 = arith.addf %15, %20 : vector<128x128xf32>
    %22 = vector.extract_strided_slice %8 {offsets = [0, 2, 0], sizes = [2, 64, 40], strides = [1, 1, 1]} : vector<2x68x40xbf16> to vector<2x64x40xbf16>
    %23 = vector.shape_cast %22 : vector<2x64x40xbf16> to vector<128x40xbf16>
    %c2 = arith.constant 2 : index
    %c0_9 = arith.constant 0 : index
    %c0_10 = arith.constant 0 : index
    %24 = vector.load %arg2[%c2, %c0_9, %c0_10] : memref<5x40x128xbf16, #tpu.memory_space<vmem>>, vector<1x40x128xbf16>
    %25 = vector.shape_cast %24 : vector<1x40x128xbf16> to vector<40x128xbf16>
    %cst_11 = arith.constant dense<0.000000e+00> : vector<128x128xf32>
    %26 = tpu.matmul %23, %25, %cst_11 {dimension_numbers = #tpu.dot_dimension_numbers<[1], [0], [0], [1], [0, 0, 1, 1], [], []>} : vector<128x40xbf16>, vector<40x128xbf16>, vector<128x128xf32> -> vector<128x128xf32>
    %27 = arith.addf %21, %26 : vector<128x128xf32>
    %28 = vector.extract_strided_slice %8 {offsets = [0, 3, 0], sizes = [2, 64, 40], strides = [1, 1, 1]} : vector<2x68x40xbf16> to vector<2x64x40xbf16>
    %29 = vector.shape_cast %28 : vector<2x64x40xbf16> to vector<128x40xbf16>
    %c3 = arith.constant 3 : index
    %c0_12 = arith.constant 0 : index
    %c0_13 = arith.constant 0 : index
    %30 = vector.load %arg2[%c3, %c0_12, %c0_13] : memref<5x40x128xbf16, #tpu.memory_space<vmem>>, vector<1x40x128xbf16>
    %31 = vector.shape_cast %30 : vector<1x40x128xbf16> to vector<40x128xbf16>
    %cst_14 = arith.constant dense<0.000000e+00> : vector<128x128xf32>
    %32 = tpu.matmul %29, %31, %cst_14 {dimension_numbers = #tpu.dot_dimension_numbers<[1], [0], [0], [1], [0, 0, 1, 1], [], []>} : vector<128x40xbf16>, vector<40x128xbf16>, vector<128x128xf32> -> vector<128x128xf32>
    %33 = arith.addf %27, %32 : vector<128x128xf32>
    %34 = vector.extract_strided_slice %8 {offsets = [0, 4, 0], sizes = [2, 64, 40], strides = [1, 1, 1]} : vector<2x68x40xbf16> to vector<2x64x40xbf16>
    %35 = vector.shape_cast %34 : vector<2x64x40xbf16> to vector<128x40xbf16>
    %c4 = arith.constant 4 : index
    %c0_15 = arith.constant 0 : index
    %c0_16 = arith.constant 0 : index
    %36 = vector.load %arg2[%c4, %c0_15, %c0_16] : memref<5x40x128xbf16, #tpu.memory_space<vmem>>, vector<1x40x128xbf16>
    %37 = vector.shape_cast %36 : vector<1x40x128xbf16> to vector<40x128xbf16>
    %cst_17 = arith.constant dense<0.000000e+00> : vector<128x128xf32>
    %38 = tpu.matmul %35, %37, %cst_17 {dimension_numbers = #tpu.dot_dimension_numbers<[1], [0], [0], [1], [0, 0, 1, 1], [], []>} : vector<128x40xbf16>, vector<40x128xbf16>, vector<128x128xf32> -> vector<128x128xf32>
    %39 = arith.addf %33, %38 : vector<128x128xf32>
    %c0_18 = arith.constant 0 : index
    %c0_19 = arith.constant 0 : index
    %40 = vector.load %arg3[%c0_18, %c0_19] : memref<1x128xf32, #tpu.memory_space<vmem>>, vector<1x128xf32>
    %41 = vector.broadcast %40 : vector<1x128xf32> to vector<128x128xf32>
    %42 = arith.addf %39, %41 : vector<128x128xf32>
    %cst_20 = arith.constant 0.000000e+00 : f32
    %43 = vector.broadcast %cst_20 : f32 to vector<128x128xf32>
    %44 = arith.maximumf %42, %43 : vector<128x128xf32>
    %cst_21 = arith.constant 0.000000e+00 : bf16
    %45 = vector.broadcast %cst_21 : bf16 to vector<2x2x128xbf16>
    %c0_22 = arith.constant 0 : index
    %c0_23 = arith.constant 0 : index
    %c0_24 = arith.constant 0 : index
    %46 = vector.load %arg9[%c0_22, %c0_23, %c0_24] : memref<2x68x128xbf16, #tpu.memory_space<vmem>>, vector<2x2x128xbf16>
    tpu.vector_store %arg9[%c0_22, %c0_23, %c0_24], %45 {strides = array<i32>} : memref<2x68x128xbf16, #tpu.memory_space<vmem>>, vector<2x2x128xbf16>,
    %c0_25 = arith.constant 0 : index
    %c66 = arith.constant 66 : index
    %c0_26 = arith.constant 0 : index
    %47 = vector.load %arg9[%c0_25, %c66, %c0_26] : memref<2x68x128xbf16, #tpu.memory_space<vmem>>, vector<2x2x128xbf16>
    tpu.vector_store %arg9[%c0_25, %c66, %c0_26], %45 {strides = array<i32>} : memref<2x68x128xbf16, #tpu.memory_space<vmem>>, vector<2x2x128xbf16>,
    %48 = arith.truncf %44 : vector<128x128xf32> to vector<128x128xbf16>
    %49 = vector.shape_cast %48 : vector<128x128xbf16> to vector<2x64x128xbf16>
    %c0_27 = arith.constant 0 : index
    %c2_28 = arith.constant 2 : index
    %c0_29 = arith.constant 0 : index
    %50 = vector.load %arg9[%c0_27, %c2_28, %c0_29] : memref<2x68x128xbf16, #tpu.memory_space<vmem>>, vector<2x64x128xbf16>
    tpu.vector_store %arg9[%c0_27, %c2_28, %c0_29], %49 {strides = array<i32>} : memref<2x68x128xbf16, #tpu.memory_space<vmem>>, vector<2x64x128xbf16>,
    %cst_30 = arith.constant 0.000000e+00 : f32
    %51 = vector.broadcast %cst_30 : f32 to vector<128x128xf32>
    %c0_31 = arith.constant 0 : index
    %c1_32 = arith.constant 1 : index
    %c0_33 = arith.constant 0 : index
    %52 = vector.load %arg9[%c0_31, %c1_32, %c0_33] : memref<2x68x128xbf16, #tpu.memory_space<vmem>>, vector<2x64x128xbf16>
    %53 = vector.shape_cast %52 : vector<2x64x128xbf16> to vector<128x128xbf16>
    %c0_34 = arith.constant 0 : index
    %c0_35 = arith.constant 0 : index
    %c0_36 = arith.constant 0 : index
    %54 = vector.load %arg4[%c0_34, %c0_35, %c0_36] : memref<3x128x128xbf16, #tpu.memory_space<vmem>>, vector<1x128x128xbf16>
    %55 = vector.shape_cast %54 : vector<1x128x128xbf16> to vector<128x128xbf16>
    %cst_37 = arith.constant dense<0.000000e+00> : vector<128x128xf32>
    %56 = tpu.matmul %53, %55, %cst_37 {dimension_numbers = #tpu.dot_dimension_numbers<[1], [0], [0], [1], [0, 0, 1, 1], [], []>} : vector<128x128xbf16>, vector<128x128xbf16>, vector<128x128xf32> -> vector<128x128xf32>
    %57 = arith.addf %51, %56 : vector<128x128xf32>
    %c0_38 = arith.constant 0 : index
    %c2_39 = arith.constant 2 : index
    %c0_40 = arith.constant 0 : index
    %58 = vector.load %arg9[%c0_38, %c2_39, %c0_40] : memref<2x68x128xbf16, #tpu.memory_space<vmem>>, vector<2x64x128xbf16>
    %59 = vector.shape_cast %58 : vector<2x64x128xbf16> to vector<128x128xbf16>
    %c1_41 = arith.constant 1 : index
    %c0_42 = arith.constant 0 : index
    %c0_43 = arith.constant 0 : index
    %60 = vector.load %arg4[%c1_41, %c0_42, %c0_43] : memref<3x128x128xbf16, #tpu.memory_space<vmem>>, vector<1x128x128xbf16>
    %61 = vector.shape_cast %60 : vector<1x128x128xbf16> to vector<128x128xbf16>
    %cst_44 = arith.constant dense<0.000000e+00> : vector<128x128xf32>
    %62 = tpu.matmul %59, %61, %cst_44 {dimension_numbers = #tpu.dot_dimension_numbers<[1], [0], [0], [1], [0, 0, 1, 1], [], []>} : vector<128x128xbf16>, vector<128x128xbf16>, vector<128x128xf32> -> vector<128x128xf32>
    %63 = arith.addf %57, %62 : vector<128x128xf32>
    %c0_45 = arith.constant 0 : index
    %c3_46 = arith.constant 3 : index
    %c0_47 = arith.constant 0 : index
    %64 = vector.load %arg9[%c0_45, %c3_46, %c0_47] : memref<2x68x128xbf16, #tpu.memory_space<vmem>>, vector<2x64x128xbf16>
    %65 = vector.shape_cast %64 : vector<2x64x128xbf16> to vector<128x128xbf16>
    %c2_48 = arith.constant 2 : index
    %c0_49 = arith.constant 0 : index
    %c0_50 = arith.constant 0 : index
    %66 = vector.load %arg4[%c2_48, %c0_49, %c0_50] : memref<3x128x128xbf16, #tpu.memory_space<vmem>>, vector<1x128x128xbf16>
    %67 = vector.shape_cast %66 : vector<1x128x128xbf16> to vector<128x128xbf16>
    %cst_51 = arith.constant dense<0.000000e+00> : vector<128x128xf32>
    %68 = tpu.matmul %65, %67, %cst_51 {dimension_numbers = #tpu.dot_dimension_numbers<[1], [0], [0], [1], [0, 0, 1, 1], [], []>} : vector<128x128xbf16>, vector<128x128xbf16>, vector<128x128xf32> -> vector<128x128xf32>
    %69 = arith.addf %63, %68 : vector<128x128xf32>
    %c0_52 = arith.constant 0 : index
    %c0_53 = arith.constant 0 : index
    %70 = vector.load %arg5[%c0_52, %c0_53] : memref<1x128xf32, #tpu.memory_space<vmem>>, vector<1x128xf32>
    %71 = vector.broadcast %70 : vector<1x128xf32> to vector<128x128xf32>
    %72 = arith.addf %69, %71 : vector<128x128xf32>
    %cst_54 = arith.constant 0.000000e+00 : f32
    %73 = vector.broadcast %cst_54 : f32 to vector<128x128xf32>
    %74 = arith.maximumf %72, %73 : vector<128x128xf32>
    %75 = arith.truncf %74 : vector<128x128xf32> to vector<128x128xbf16>
    %c0_55 = arith.constant 0 : index
    %c0_56 = arith.constant 0 : index
    %76 = vector.load %arg6[%c0_55, %c0_56] : memref<128x128xbf16, #tpu.memory_space<vmem>>, vector<128x128xbf16>
    %cst_57 = arith.constant dense<0.000000e+00> : vector<128x128xf32>
    %77 = tpu.matmul %75, %76, %cst_57 {dimension_numbers = #tpu.dot_dimension_numbers<[1], [0], [0], [1], [0, 0, 1, 1], [], []>} : vector<128x128xbf16>, vector<128x128xbf16>, vector<128x128xf32> -> vector<128x128xf32>
    %c0_58 = arith.constant 0 : index
    %c0_59 = arith.constant 0 : index
    %78 = vector.load %arg7[%c0_58, %c0_59] : memref<1x128xf32, #tpu.memory_space<vmem>>, vector<1x128xf32>
    %79 = vector.broadcast %78 : vector<1x128xf32> to vector<128x128xf32>
    %80 = arith.addf %77, %79 : vector<128x128xf32>
    %81 = vector.shape_cast %80 : vector<128x128xf32> to vector<2x64x128xf32>
    %c0_60 = arith.constant 0 : index
    %c0_61 = arith.constant 0 : index
    %c0_62 = arith.constant 0 : index
    %82 = vector.load %arg8[%c0_60, %c0_61, %c0_62] : memref<2x64x128xf32, #tpu.memory_space<vmem>>, vector<2x64x128xf32>
    tpu.vector_store %arg8[%c0_60, %c0_61, %c0_62], %81 {strides = array<i32>} : memref<2x64x128xf32, #tpu.memory_space<vmem>>, vector<2x64x128xf32>,
    return
  }
  func.func @transform_0(%arg0: i32) -> (i32, i32, i32) {
    %c0_i32 = arith.constant 0 : i32
    %c0_i32_0 = arith.constant 0 : i32
    %c0_i32_1 = arith.constant 0 : i32
    return %arg0, %c0_i32, %c0_i32_0 : i32, i32, i32
  }
  func.func @transform_1(%arg0: i32) -> (i32, i32, i32) {
    %c0_i32 = arith.constant 0 : i32
    %c0_i32_0 = arith.constant 0 : i32
    %c0_i32_1 = arith.constant 0 : i32
    %c0_i32_2 = arith.constant 0 : i32
    return %c0_i32, %c0_i32_0, %c0_i32_1 : i32, i32, i32
  }
  func.func @transform_2(%arg0: i32) -> (i32, i32) {
    %c0_i32 = arith.constant 0 : i32
    %c0_i32_0 = arith.constant 0 : i32
    %c0_i32_1 = arith.constant 0 : i32
    return %c0_i32, %c0_i32_0 : i32, i32
  }
  func.func @transform_3(%arg0: i32) -> (i32, i32, i32) {
    %c0_i32 = arith.constant 0 : i32
    %c0_i32_0 = arith.constant 0 : i32
    %c0_i32_1 = arith.constant 0 : i32
    %c0_i32_2 = arith.constant 0 : i32
    return %c0_i32, %c0_i32_0, %c0_i32_1 : i32, i32, i32
  }
  func.func @transform_4(%arg0: i32) -> (i32, i32) {
    %c0_i32 = arith.constant 0 : i32
    %c0_i32_0 = arith.constant 0 : i32
    %c0_i32_1 = arith.constant 0 : i32
    return %c0_i32, %c0_i32_0 : i32, i32
  }
  func.func @transform_5(%arg0: i32) -> (i32, i32) {
    %c0_i32 = arith.constant 0 : i32
    %c0_i32_0 = arith.constant 0 : i32
    %c0_i32_1 = arith.constant 0 : i32
    return %c0_i32, %c0_i32_0 : i32, i32
  }
  func.func @transform_6(%arg0: i32) -> (i32, i32) {
    %c0_i32 = arith.constant 0 : i32
    %c0_i32_0 = arith.constant 0 : i32
    %c0_i32_1 = arith.constant 0 : i32
    return %c0_i32, %c0_i32_0 : i32, i32
  }
  func.func @transform_7(%arg0: i32) -> (i32, i32, i32) {
    %c0_i32 = arith.constant 0 : i32
    %c0_i32_0 = arith.constant 0 : i32
    %c0_i32_1 = arith.constant 0 : i32
    return %arg0, %c0_i32, %c0_i32_0 : i32, i32, i32
  }
}

</mosaic_0001>

<llo_original>
// kernel: cnn_forward.1
$region0: #{cnn_forward.1}
  #allocation0 [shape = 'u32[]', space=smem, size = 0x4, offset = 0x4, fixed_abs, tag = 'smem constant byte address 0x4 - core index']
  #allocation1 [shape = 'u32[144,128]{1,0:T(1,128)}', space=vmem, size = 0x12000, scoped, tag = 'internal scratch']
  #allocation2 [shape = 'bf16[2,68,128]{2,1,0:T(8,128)(2,1)}', space=vmem, size = 0x9000, scoped, tag = 'scratch operand']
  %s0 = inlined_call_operand.vmem [shape: s32[4,1,68], index: 0, kind: input, shape index: {}]
  %s1 = inlined_call_operand.vmem [shape: bf16[5,40,128], index: 1, kind: input, shape index: {}]
  %s2 = inlined_call_operand.vmem [shape: f32[1,128], index: 2, kind: input, shape index: {}]
  %s3 = inlined_call_operand.vmem [shape: bf16[3,128,128], index: 3, kind: input, shape index: {}]
  %s4 = inlined_call_operand.vmem [shape: f32[1,128], index: 4, kind: input, shape index: {}]
  %s5 = inlined_call_operand.vmem [shape: bf16[128,128], index: 5, kind: input, shape index: {}]
  %s6 = inlined_call_operand.vmem [shape: f32[1,128], index: 6, kind: input, shape index: {}]
  %s7 = inlined_call_operand.vmem [shape: f32[4,64,128], index: 7, kind: output, shape index: {}]
  %s8 = sld [smem:[#allocation0]]
  $region61: #{cnn_forward.1} parent=0
    _
  %s10 = ssub.s32 1, %s8
  %s11 = scalar_select 0, %s10, %s8
  loop: start=0, step=1, limit=4
  $region2: #{cnn_forward.1} parent=0 // loop_pre_header
    _
  $region3: #{cnn_forward.1} parent=0 // loop_header
    %s13 = sphi 0, %s17
    %p14 = scmp.ge.s32.totalorder %s13, 4
    %s23 = sphi 0, %s25
    %s26 = sphi 0, %s23
    %s27 = sphi 0, %s26
    %s43 = sphi 0, %s27
    %s47 = sphi 0, %s47
    %s49 = sphi 0, %s47
    %s50 = sphi 0, %s49
    %s64 = sphi 0, %s50
    %s68 = sphi 0, %s68
    %s70 = sphi 0, %s68
    %s71 = sphi 0, %s70
    %s85 = sphi 0, %s71
    %s89 = sphi 0, %s89
    %s91 = sphi 0, %s89
    %s92 = sphi 0, %s91
    %s106 = sphi 0, %s92
    %s110 = sphi 0, %s110
    %s112 = sphi 0, %s110
    %s113 = sphi 0, %s112
    %s127 = sphi 0, %s113
    %s131 = sphi 0, %s131
    %s133 = sphi 0, %s131
    %s134 = sphi 0, %s133
    %s148 = sphi 0, %s134
    %s152 = sphi 0, %s152
    %s154 = sphi 0, %s152
    %s155 = sphi 0, %s154
    %s169 = sphi 0, %s155
    %s175 = sphi 0, %s177
    %s178 = sphi 0, %s175
    %s179 = sphi 0, %s178
    %s195 = sphi 0, %s179
  $region4: #{cnn_forward.1} parent=0 // loop_header_branch
    %16 = sbr.rel (%p14) target = $region8
  $region5: #{cnn_forward.1} parent=0 // loop_body
    %s18 = ssub.s32 %s13, 1
    %s19 = ssub.s32 %s13, 2
    %s20 = sadd.s32 %s13, 1
    %s21 = ssub.s32 %s13, %s20
    %p22 = scmp.eq.s32.totalorder %s21, 0
    %s24 = sadd.s32 %s23, 1
    %s25 = scalar_select %p22, %s23, %s24
    %p28 = pneg %p22
    %p29 = scmp.eq.s32.totalorder %s13, 1
    %p30 = por %p28, %p29
    %p31 = scmp.ne.s32.totalorder %s23, %s26
    %p32 = scmp.eq.s32.totalorder %s13, 0
    %p33 = por %p31, %p32
    %p34 = scmp.ne.s32.totalorder %s23, %s26
    %p35 = scmp.eq.s32.totalorder %s18, 1
    %p36 = por %p34, %p35
    %p37 = scmp.ne.s32.totalorder %s26, %s27
    %p38 = scmp.eq.s32.totalorder %s18, 0
    %p39 = por %p37, %p38
    %p40 = scmp.ne.s32.totalorder %s26, %s27
    %p41 = scmp.eq.s32.totalorder %s19, 1
    %p42 = por %p40, %p41
    %p44 = scmp.ne.s32.totalorder %s27, %s43
    %p45 = scmp.eq.s32.totalorder %s19, 0
    %p46 = por %p44, %p45
    %s48 = sadd.s32 %s47, 1
    %p51 = scmp.eq.s32.totalorder %s13, 1
    %p52 = scmp.ne.s32.totalorder %s47, %s49
    %p53 = scmp.eq.s32.totalorder %s13, 0
    %p54 = por %p52, %p53
    %p55 = scmp.ne.s32.totalorder %s47, %s49
    %p56 = scmp.eq.s32.totalorder %s18, 1
    %p57 = por %p55, %p56
    %p58 = scmp.ne.s32.totalorder %s49, %s50
    %p59 = scmp.eq.s32.totalorder %s18, 0
    %p60 = por %p58, %p59
    %p61 = scmp.ne.s32.totalorder %s49, %s50
    %p62 = scmp.eq.s32.totalorder %s19, 1
    %p63 = por %p61, %p62
    %p65 = scmp.ne.s32.totalorder %s50, %s64
    %p66 = scmp.eq.s32.totalorder %s19, 0
    %p67 = por %p65, %p66
    %s69 = sadd.s32 %s68, 1
    %p72 = scmp.eq.s32.totalorder %s13, 1
    %p73 = scmp.ne.s32.totalorder %s68, %s70
    %p74 = scmp.eq.s32.totalorder %s13, 0
    %p75 = por %p73, %p74
    %p76 = scmp.ne.s32.totalorder %s68, %s70
    %p77 = scmp.eq.s32.totalorder %s18, 1
    %p78 = por %p76, %p77
    %p79 = scmp.ne.s32.totalorder %s70, %s71
    %p80 = scmp.eq.s32.totalorder %s18, 0
    %p81 = por %p79, %p80
    %p82 = scmp.ne.s32.totalorder %s70, %s71
    %p83 = scmp.eq.s32.totalorder %s19, 1
    %p84 = por %p82, %p83
    %p86 = scmp.ne.s32.totalorder %s71, %s85
    %p87 = scmp.eq.s32.totalorder %s19, 0
    %p88 = por %p86, %p87
    %s90 = sadd.s32 %s89, 1
    %p93 = scmp.eq.s32.totalorder %s13, 1
    %p94 = scmp.ne.s32.totalorder %s89, %s91
    %p95 = scmp.eq.s32.totalorder %s13, 0
    %p96 = por %p94, %p95
    %p97 = scmp.ne.s32.totalorder %s89, %s91
    %p98 = scmp.eq.s32.totalorder %s18, 1
    %p99 = por %p97, %p98
    %p100 = scmp.ne.s32.totalorder %s91, %s92
    %p101 = scmp.eq.s32.totalorder %s18, 0
    %p102 = por %p100, %p101
    %p103 = scmp.ne.s32.totalorder %s91, %s92
    %p104 = scmp.eq.s32.totalorder %s19, 1
    %p105 = por %p103, %p104
    %p107 = scmp.ne.s32.totalorder %s92, %s106
    %p108 = scmp.eq.s32.totalorder %s19, 0
    %p109 = por %p107, %p108
    %s111 = sadd.s32 %s110, 1
    %p114 = scmp.eq.s32.totalorder %s13, 1
    %p115 = scmp.ne.s32.totalorder %s110, %s112
    %p116 = scmp.eq.s32.totalorder %s13, 0
    %p117 = por %p115, %p116
    %p118 = scmp.ne.s32.totalorder %s110, %s112
    %p119 = scmp.eq.s32.totalorder %s18, 1
    %p120 = por %p118, %p119
    %p121 = scmp.ne.s32.totalorder %s112, %s113
    %p122 = scmp.eq.s32.totalorder %s18, 0
    %p123 = por %p121, %p122
    %p124 = scmp.ne.s32.totalorder %s112, %s113
    %p125 = scmp.eq.s32.totalorder %s19, 1
    %p126 = por %p124, %p125
    %p128 = scmp.ne.s32.totalorder %s113, %s127
    %p129 = scmp.eq.s32.totalorder %s19, 0
    %p130 = por %p128, %p129
    %s132 = sadd.s32 %s131, 1
    %p135 = scmp.eq.s32.totalorder %s13, 1
    %p136 = scmp.ne.s32.totalorder %s131, %s133
    %p137 = scmp.eq.s32.totalorder %s13, 0
    %p138 = por %p136, %p137
    %p139 = scmp.ne.s32.totalorder %s131, %s133
    %p140 = scmp.eq.s32.totalorder %s18, 1
    %p141 = por %p139, %p140
    %p142 = scmp.ne.s32.totalorder %s133, %s134
    %p143 = scmp.eq.s32.totalorder %s18, 0
    %p144 = por %p142, %p143
    %p145 = scmp.ne.s32.totalorder %s133, %s134
    %p146 = scmp.eq.s32.totalorder %s19, 1
    %p147 = por %p145, %p146
    %p149 = scmp.ne.s32.totalorder %s134, %s148
    %p150 = scmp.eq.s32.totalorder %s19, 0
    %p151 = por %p149, %p150
    %s153 = sadd.s32 %s152, 1
    %p156 = scmp.eq.s32.totalorder %s13, 1
    %p157 = scmp.ne.s32.totalorder %s152, %s154
    %p158 = scmp.eq.s32.totalorder %s13, 0
    %p159 = por %p157, %p158
    %p160 = scmp.ne.s32.totalorder %s152, %s154
    %p161 = scmp.eq.s32.totalorder %s18, 1
    %p162 = por %p160, %p161
    %p163 = scmp.ne.s32.totalorder %s154, %s155
    %p164 = scmp.eq.s32.totalorder %s18, 0
    %p165 = por %p163, %p164
    %p166 = scmp.ne.s32.totalorder %s154, %s155
    %p167 = scmp.eq.s32.totalorder %s19, 1
    %p168 = por %p166, %p167
    %p170 = scmp.ne.s32.totalorder %s155, %s169
    %p171 = scmp.eq.s32.totalorder %s19, 0
    %p172 = por %p170, %p171
    %s173 = ssub.s32 %s13, %s20
    %p174 = scmp.eq.s32.totalorder %s173, 0
    %s176 = sadd.s32 %s175, 1
    %s177 = scalar_select %p174, %s175, %s176
    %p180 = pneg %p174
    %p181 = scmp.eq.s32.totalorder %s13, 1
    %p182 = por %p180, %p181
    %p183 = scmp.ne.s32.totalorder %s175, %s178
    %p184 = scmp.eq.s32.totalorder %s13, 0
    %p185 = por %p183, %p184
    %p186 = scmp.ne.s32.totalorder %s175, %s178
    %p187 = scmp.eq.s32.totalorder %s18, 1
    %p188 = por %p186, %p187
    %p189 = scmp.ne.s32.totalorder %s178, %s179
    %p190 = scmp.eq.s32.totalorder %s18, 0
    %p191 = por %p189, %p190
    %p192 = scmp.ne.s32.totalorder %s178, %s179
    %p193 = scmp.eq.s32.totalorder %s19, 1
    %p194 = por %p192, %p193
    %p196 = scmp.ne.s32.totalorder %s179, %s195
    %p197 = scmp.eq.s32.totalorder %s19, 0
    %p198 = por %p196, %p197
    %p199 = scmp.le.s32.totalorder 1, %s13
    %p200 = scmp.lt.s32.totalorder %s13, 3
    %p201 = pnand %p199, %p200
    %p202 = pneg %p201
    // Predicated region
    $region9: #{cnn_forward.1} parent=5 // pred_check
      _
    $region10: #{cnn_forward.1} parent=5 // pred_check_branch
      %204 = sbr.rel (%p201) target = $region12
    $region11: #{cnn_forward.1} parent=5 // pred_region
      %s205 = ssub.s32 %s13, 1
      // Predicated region
      $region13: #{cnn_forward.1} parent=11 // pred_check
        %p206 = pneg %p60
      $region14: #{cnn_forward.1} parent=11 // pred_check_branch
        %208 = sbr.rel (%p206) target = $region16
      $region15: #{cnn_forward.1} parent=11 // pred_region
        _
      $region16: #{cnn_forward.1} parent=11 // pred_fallthru
        _
      // Predicated region
      $region17: #{cnn_forward.1} parent=11 // pred_check
        %p209 = pneg %p81
      $region18: #{cnn_forward.1} parent=11 // pred_check_branch
        %211 = sbr.rel (%p209) target = $region20
      $region19: #{cnn_forward.1} parent=11 // pred_region
        _
      $region20: #{cnn_forward.1} parent=11 // pred_fallthru
        _
      // Predicated region
      $region21: #{cnn_forward.1} parent=11 // pred_check
        %p212 = pneg %p102
      $region22: #{cnn_forward.1} parent=11 // pred_check_branch
        %214 = sbr.rel (%p212) target = $region24
      $region23: #{cnn_forward.1} parent=11 // pred_region
        _
      $region24: #{cnn_forward.1} parent=11 // pred_fallthru
        _
      // Predicated region
      $region25: #{cnn_forward.1} parent=11 // pred_check
        %p215 = pneg %p123
      $region26: #{cnn_forward.1} parent=11 // pred_check_branch
        %217 = sbr.rel (%p215) target = $region28
      $region27: #{cnn_forward.1} parent=11 // pred_region
        _
      $region28: #{cnn_forward.1} parent=11 // pred_fallthru
        _
      // Predicated region
      $region29: #{cnn_forward.1} parent=11 // pred_check
        %p218 = pneg %p144
      $region30: #{cnn_forward.1} parent=11 // pred_check_branch
        %220 = sbr.rel (%p218) target = $region32
      $region31: #{cnn_forward.1} parent=11 // pred_region
        _
      $region32: #{cnn_forward.1} parent=11 // pred_fallthru
        _
      // Predicated region
      $region33: #{cnn_forward.1} parent=11 // pred_check
        %p221 = pneg %p165
      $region34: #{cnn_forward.1} parent=11 // pred_check_branch
        %223 = sbr.rel (%p221) target = $region36
      $region35: #{cnn_forward.1} parent=11 // pred_region
        _
      $region36: #{cnn_forward.1} parent=11 // pred_fallthru
        _
    $region12: #{cnn_forward.1} parent=5 // pred_fallthru
      _
    %p224 = scmp.lt.s32.totalorder %s13, 2
    // Predicated region
    $region37: #{cnn_forward.1} parent=5 // pred_check
      %p225 = pneg %p224
    $region38: #{cnn_forward.1} parent=5 // pred_check_branch
      %227 = sbr.rel (%p225) target = $region40
    $region39: #{cnn_forward.1} parent=5 // pred_region
      // Predicated region
      $region41: #{cnn_forward.1} parent=39 // pred_check
        %p228 = pneg %p33
      $region42: #{cnn_forward.1} parent=39 // pred_check_branch
        %230 = sbr.rel (%p228) target = $region44
      $region43: #{cnn_forward.1} parent=39 // pred_region
        %s231 = smul.u32 2, %s13
        %p232 = scmp.lt.s32.totalorder %s231, 3
        %s233 = scalar_select %p232, %s231, 3
        %s234 = scalar_lea.vmem %s0, %s233
        %s235 = smul.u32 2, %s13
      $region44: #{cnn_forward.1} parent=39 // pred_fallthru
        _
    $region40: #{cnn_forward.1} parent=5 // pred_fallthru
      _
    %p236 = scmp.le.s32.totalorder 1, %s13
    %p237 = scmp.lt.s32.totalorder %s13, 3
    %p238 = pnand %p236, %p237
    %p239 = pneg %p238
    // Predicated region
    $region45: #{cnn_forward.1} parent=5 // pred_check
      _
    $region46: #{cnn_forward.1} parent=5 // pred_check_branch
      %241 = sbr.rel (%p238) target = $region48
    $region47: #{cnn_forward.1} parent=5 // pred_region
      %s242 = ssub.s32 %s13, 1
      %s243 = smul.u32 2, %s18
      %p244 = scmp.lt.s32.totalorder %s243, 3
      %s245 = scalar_select %p244, %s243, 3
      %s246 = scalar_lea.vmem %s0, %s245
      %p247 = pneg %p39
      %p248 = pneg %p36
      %p249 = pneg %p60
      %p250 = pneg %p57
      %p251 = pneg %p81
      %p252 = pneg %p78
      %p253 = pneg %p102
      %p254 = pneg %p99
      %p255 = pneg %p123
      %p256 = pneg %p120
      %p257 = pneg %p144
      %p258 = pneg %p141
      %p259 = pneg %p165
      %p260 = pneg %p162
      %p261 = pneg %p191
      %p262 = pneg %p188
      %s263 = smul.u32 2, %s18
      %p264 = scmp.lt.s32.totalorder %s263, 3
      %s265 = scalar_select %p264, %s263, 3
      %s266 = smul.addr %s265, 8
      %s267 = smul.addr %s266, 8
      %s268 = scalar_lea.vmem %s7, %s267
      %s269 = smul.u32 2, %s18
      %p270 = scmp.lt.s32.totalorder %s269, 3
      %s271 = scalar_select %p270, %s269, 3
      %s272 = scalar_lea.vmem %s0, %s271
      %s273 = smul.u32 2, %s18
      %s274 = smul.u32 2, %s18
      %p275 = scmp.lt.s32.totalorder %s274, 3
      %s276 = scalar_select %p275, %s274, 3
      %s277 = smul.addr %s276, 8
      %s278 = smul.addr %s277, 8
      %s279 = scalar_lea.vmem %s7, %s278
      %s280 = smul.u32 2, %s18
      %v282 = vld [vmem:[%s272] sm:$0x1]
      %v283 = vld [vmem:[%s272 + $0x1] sm:$0x1]
      %v284 = vlaneseq
      %v285 = vand.u32 %v284, 127
      %v286 = vlaneseq
      %v287 = vshrl.u32 %v286, 7
      %v288 = vsub.s32 0, %v287
      %v289 = vrot.slane %v282, %v288
      %291 = vbcast.lane.b32.xlu0 %v289, 256
      %v292 = vpop.permute.xlu0 %291
      %s294 = sor.u32 256, 8
      %295 = vbcast.lane.b32.xlu0 %v289, %s294
      %v296 = vpop.permute.xlu0 %295
      %s298 = sor.u32 256, 16
      %299 = vbcast.lane.b32.xlu0 %v289, %s298
      %v300 = vpop.permute.xlu0 %299
      %s302 = sor.u32 256, 24
      %303 = vbcast.lane.b32.xlu0 %v289, %s302
      %v304 = vpop.permute.xlu0 %303
      %s306 = sor.u32 256, 32
      %307 = vbcast.lane.b32.xlu0 %v289, %s306
      %v308 = vpop.permute.xlu0 %307
      %s310 = sor.u32 256, 40
      %311 = vbcast.lane.b32.xlu0 %v289, %s310
      %v312 = vpop.permute.xlu0 %311
      %s314 = sor.u32 256, 48
      %315 = vbcast.lane.b32.xlu0 %v289, %s314
      %v316 = vpop.permute.xlu0 %315
      %s318 = sor.u32 256, 56
      %319 = vbcast.lane.b32.xlu0 %v289, %s318
      %v320 = vpop.permute.xlu0 %319
      %s322 = sor.u32 256, 64
      %323 = vbcast.lane.b32.xlu0 %v289, %s322
      %v324 = vpop.permute.xlu0 %323
      %v325 = vlaneseq
      %v326 = vshrl.u32 %v325, 7
      %v327 = vsub.s32 0, %v326
      %v328 = vrot.slane %v283, %v327
      %330 = vbcast.lane.b32.xlu0 %v328, 256
      %v331 = vpop.permute.xlu0 %330
      %s333 = sor.u32 256, 8
      %334 = vbcast.lane.b32.xlu0 %v328, %s333
      %v335 = vpop.permute.xlu0 %334
      %s337 = sor.u32 256, 16
      %338 = vbcast.lane.b32.xlu0 %v328, %s337
      %v339 = vpop.permute.xlu0 %338
      %s341 = sor.u32 256, 24
      %342 = vbcast.lane.b32.xlu0 %v328, %s341
      %v343 = vpop.permute.xlu0 %342
      %s345 = sor.u32 256, 32
      %346 = vbcast.lane.b32.xlu0 %v328, %s345
      %v347 = vpop.permute.xlu0 %346
      %s349 = sor.u32 256, 40
      %350 = vbcast.lane.b32.xlu0 %v328, %s349
      %v351 = vpop.permute.xlu0 %350
      %s353 = sor.u32 256, 48
      %354 = vbcast.lane.b32.xlu0 %v328, %s353
      %v355 = vpop.permute.xlu0 %354
      %s357 = sor.u32 256, 56
      %358 = vbcast.lane.b32.xlu0 %v328, %s357
      %v359 = vpop.permute.xlu0 %358
      %s361 = sor.u32 256, 64
      %362 = vbcast.lane.b32.xlu0 %v328, %s361
      %v363 = vpop.permute.xlu0 %362
      %vm364 = vcmp.eq.s32.totalorder %v285, %v292
      %vm365 = vcmp.eq.s32.totalorder %v285, %v296
      %vm366 = vcmp.eq.s32.totalorder %v285, %v300
      %vm367 = vcmp.eq.s32.totalorder %v285, %v304
      %vm368 = vcmp.eq.s32.totalorder %v285, %v308
      %vm369 = vcmp.eq.s32.totalorder %v285, %v312
      %vm370 = vcmp.eq.s32.totalorder %v285, %v316
      %vm371 = vcmp.eq.s32.totalorder %v285, %v320
      %vm372 = vcmp.eq.s32.totalorder %v285, %v324
      %vm373 = vcmp.eq.s32.totalorder %v285, %v331
      %vm374 = vcmp.eq.s32.totalorder %v285, %v335
      %vm375 = vcmp.eq.s32.totalorder %v285, %v339
      %vm376 = vcmp.eq.s32.totalorder %v285, %v343
      %vm377 = vcmp.eq.s32.totalorder %v285, %v347
      %vm378 = vcmp.eq.s32.totalorder %v285, %v351
      %vm379 = vcmp.eq.s32.totalorder %v285, %v355
      %vm380 = vcmp.eq.s32.totalorder %v285, %v359
      %vm381 = vcmp.eq.s32.totalorder %v285, %v363
      %v382 = vsel %vm364, 1, 0
      %v383 = vsel %vm365, 1, 0
      %v384 = vsel %vm366, 1, 0
      %v385 = vsel %vm367, 1, 0
      %v386 = vsel %vm368, 1, 0
      %v387 = vsel %vm369, 1, 0
      %v388 = vsel %vm370, 1, 0
      %v389 = vsel %vm371, 1, 0
      %v390 = vsel %vm372, 1, 0
      %v391 = vsel %vm373, 1, 0
      %v392 = vsel %vm374, 1, 0
      %v393 = vsel %vm375, 1, 0
      %v394 = vsel %vm376, 1, 0
      %v395 = vsel %vm377, 1, 0
      %v396 = vsel %vm378, 1, 0
      %v397 = vsel %vm379, 1, 0
      %v398 = vsel %vm380, 1, 0
      %v399 = vsel %vm381, 1, 0
      %v400 = vcvt.s32.f32 %v382
      %v401 = vcvt.s32.f32 %v383
      %v402 = vcvt.s32.f32 %v384
      %v403 = vcvt.s32.f32 %v385
      %v404 = vcvt.s32.f32 %v386
      %v405 = vcvt.s32.f32 %v387
      %v406 = vcvt.s32.f32 %v388
      %v407 = vcvt.s32.f32 %v389
      %v408 = vcvt.s32.f32 %v390
      %v409 = vcvt.s32.f32 %v391
      %v410 = vcvt.s32.f32 %v392
      %v411 = vcvt.s32.f32 %v393
      %v412 = vcvt.s32.f32 %v394
      %v413 = vcvt.s32.f32 %v395
      %v414 = vcvt.s32.f32 %v396
      %v415 = vcvt.s32.f32 %v397
      %v416 = vcvt.s32.f32 %v398
      %v417 = vcvt.s32.f32 %v399
      %v418 = vpack.c.bf16 %v401, %v400
      %v419 = vpack.c.bf16 %v403, %v402
      %v420 = vpack.c.bf16 %v405, %v404
      %v421 = vpack.c.bf16 %v407, %v406
      %v422 = vpack.c.bf16 %v408, %v408
      %v423 = vpack.c.bf16 %v410, %v409
      %v424 = vpack.c.bf16 %v412, %v411
      %v425 = vpack.c.bf16 %v414, %v413
      %v426 = vpack.c.bf16 %v416, %v415
      %v427 = vpack.c.bf16 %v417, %v417
      %v428 = vld [vmem:[%s1] sm:$0xf]
      %v429 = vld [vmem:[%s1 + $0x4] sm:$0xf]
      %v430 = vld [vmem:[%s1 + $0x8] sm:$0xf]
      %v431 = vld [vmem:[%s1 + $0xc] sm:$0xf]
      %v432 = vld [vmem:[%s1 + $0x10] sm:$0xf]
      %vm433 = vsmask.f32 7424
      %v435 = vshrl.u32 %v418, 16
      %v437 = vshll.u32 %v418, 16
      %v439 = vrot.slane %v437, 1
      %v440 = vor.u32 %v435, %v439
      %v442 = vshll.u32 %v419, 16
      %v444 = vrot.slane %v442, 1
      %v445 = vsel %vm433, %v440, %v444
      %v446 = vshrl.u32 %v419, 16
      %v448 = vor.u32 %v446, %v444
      %v450 = vshll.u32 %v420, 16
      %v452 = vrot.slane %v450, 1
      %v453 = vsel %vm433, %v448, %v452
      %v454 = vshrl.u32 %v420, 16
      %v456 = vor.u32 %v454, %v452
      %v458 = vshll.u32 %v421, 16
      %v460 = vrot.slane %v458, 1
      %v461 = vsel %vm433, %v456, %v460
      %v462 = vshrl.u32 %v421, 16
      %v464 = vor.u32 %v462, %v460
      %v466 = vshll.u32 %v422, 16
      %v468 = vrot.slane %v466, 1
      %v469 = vsel %vm433, %v464, %v468
      %v471 = vshrl.u32 %v423, 16
      %v473 = vshll.u32 %v423, 16
      %v475 = vrot.slane %v473, 1
      %v476 = vor.u32 %v471, %v475
      %v478 = vshll.u32 %v424, 16
      %v480 = vrot.slane %v478, 1
      %v481 = vsel %vm433, %v476, %v480
      %v482 = vshrl.u32 %v424, 16
      %v484 = vor.u32 %v482, %v480
      %v486 = vshll.u32 %v425, 16
      %v488 = vrot.slane %v486, 1
      %v489 = vsel %vm433, %v484, %v488
      %v490 = vshrl.u32 %v425, 16
      %v492 = vor.u32 %v490, %v488
      %v494 = vshll.u32 %v426, 16
      %v496 = vrot.slane %v494, 1
      %v497 = vsel %vm433, %v492, %v496
      %v498 = vshrl.u32 %v426, 16
      %v500 = vor.u32 %v498, %v496
      %v502 = vshll.u32 %v427, 16
      %v504 = vrot.slane %v502, 1
      %v505 = vsel %vm433, %v500, %v504
      %s506 = scalar_lea.vmem %s1, 20
      %v507 = vld [vmem:[%s506] sm:$0xf]
      %v508 = vld [vmem:[%s506 + $0x4] sm:$0xf]
      %v509 = vld [vmem:[%s506 + $0x8] sm:$0xf]
      %v510 = vld [vmem:[%s506 + $0xc] sm:$0xf]
      %v511 = vld [vmem:[%s506 + $0x10] sm:$0xf]
      %v517 = vunpack.c.l.b16 %v507
      %v518 = vunpack.c.l.b16 %v508
      %v519 = vunpack.c.l.b16 %v509
      %v520 = vunpack.c.l.b16 %v510
      %v521 = vunpack.c.l.b16 %v511
      %v522 = vpack.c.b16 %v518, %v517
      %v523 = vpack.c.b16 %v520, %v519
      %v524 = vpack.c.b16 %v521, %v521
      %vm527 = vcmask 326656
      %v529 = vsel %vm527, %v445, 0
      %v532 = vsel %vm527, %v453, 0
      %v535 = vsel %vm527, %v461, 0
      %v538 = vsel %vm527, %v469, 0
      %v541 = vsel %vm527, %v481, 0
      %v544 = vsel %vm527, %v489, 0
      %v547 = vsel %vm527, %v497, 0
      %v550 = vsel %vm527, %v505, 0
      %vm552 = vcmask 1043456
      %v554 = vsel %vm552, %v524, 0
      %556 = vmatprep.subr.bf16.mxu0 0
      %557 = vmatpush1.bf16.msra.mxu0 %v522
      %558 = vmatprep.subr.bf16.mxu0 0
      %559 = vmatpush1.bf16.msra.mxu0 %v523
      %560 = vmatprep.subr.bf16.mxu0 0
      %561 = vmatpush1.bf16.msra.mxu0 %v554
      %562 = vmatprep.subr.bf16.mxu0 0
      %563 = vmatpush1.bf16.msra.mxu0 0
      %564 = vmatprep.subr.bf16.mxu0 0
      %565 = vmatpush1.bf16.msra.mxu0 0
      %566 = vmatprep.subr.bf16.mxu0 0
      %567 = vmatpush1.bf16.msra.mxu0 0
      %568 = vmatprep.subr.bf16.mxu0 0
      %569 = vmatpush1.bf16.msra.mxu0 0
      %570 = vmatprep.subr.bf16.mxu0 0
      %571 = vmatpush1.bf16.msra.mxu0 0
      %572 = vmatprep.subr.bf16.mxu0 0
      %573 = vmatpush1.bf16.msra.mxu0 0
      %574 = vmatprep.subr.bf16.mxu0 0
      %575 = vmatpush1.bf16.msra.mxu0 0
      %576 = vmatprep.subr.bf16.mxu0 0
      %577 = vmatpush1.bf16.msra.mxu0 0
      %578 = vmatprep.subr.bf16.mxu0 0
      %579 = vmatpush1.bf16.msra.mxu0 0
      %580 = vmatprep.subr.bf16.mxu0 0
      %581 = vmatpush1.bf16.msra.mxu0 0
      %582 = vmatprep.subr.bf16.mxu0 0
      %583 = vmatpush1.bf16.msra.mxu0 0
      %584 = vmatprep.subr.bf16.mxu0 0
      %585 = vmatpush1.bf16.msra.mxu0 0
      %586 = vmatprep.subr.bf16.mxu0 0
      %587 = vmatpush1.bf16.msra.mxu0 0
      %588 = vmatprep.mubr.bf16.mxu0 0
      %589 = vmatmul.mubr.bf16.gmra.mrb[0].mxu0 %v529
      %v590 = vpop.f32.mrb[0].mxu0
      %v591 = vadd.f32 0.0, %v590
      %v592 = vpop.f32.mrb[0].mxu0
      %v593 = vpop.f32.mrb[0].mxu0
      %v594 = vadd.f32 0.0, %v593
      %v595 = vpop.f32.mrb[0].mxu0
      %596 = vmatprep.mubr.bf16.mxu0 0
      %597 = vmatmul.mubr.bf16.gmra.mrb[0].mxu0 %v532
      %v598 = vpop.f32.mrb[0].mxu0
      %v599 = vadd.f32 0.0, %v598
      %v600 = vpop.f32.mrb[0].mxu0
      %v601 = vpop.f32.mrb[0].mxu0
      %v602 = vadd.f32 0.0, %v601
      %v603 = vpop.f32.mrb[0].mxu0
      %604 = vmatprep.mubr.bf16.mxu0 0
      %605 = vmatmul.mubr.bf16.gmra.mrb[0].mxu0 %v535
      %v606 = vpop.f32.mrb[0].mxu0
      %v607 = vadd.f32 0.0, %v606
      %v608 = vpop.f32.mrb[0].mxu0
      %v609 = vpop.f32.mrb[0].mxu0
      %v610 = vadd.f32 0.0, %v609
      %v611 = vpop.f32.mrb[0].mxu0
      %612 = vmatprep.mubr.bf16.mxu0 0
      %613 = vmatmul.mubr.bf16.gmra.mrb[0].mxu0 %v538
      %v614 = vpop.f32.mrb[0].mxu0
      %v615 = vadd.f32 0.0, %v614
      %v616 = vpop.f32.mrb[0].mxu0
      %v617 = vpop.f32.mrb[0].mxu0
      %v618 = vadd.f32 0.0, %v617
      %v619 = vpop.f32.mrb[0].mxu0
      %620 = vmatprep.mubr.bf16.mxu0 0
      %621 = vmatmul.mubr.bf16.gmra.mrb[0].mxu0 %v541
      %v622 = vpop.f32.mrb[0].mxu0
      %v623 = vadd.f32 0.0, %v622
      %v624 = vpop.f32.mrb[0].mxu0
      %v625 = vpop.f32.mrb[0].mxu0
      %v626 = vadd.f32 0.0, %v625
      %v627 = vpop.f32.mrb[0].mxu0
      %628 = vmatprep.mubr.bf16.mxu0 0
      %629 = vmatmul.mubr.bf16.gmra.mrb[0].mxu0 %v544
      %v630 = vpop.f32.mrb[0].mxu0
      %v631 = vadd.f32 0.0, %v630
      %v632 = vpop.f32.mrb[0].mxu0
      %v633 = vpop.f32.mrb[0].mxu0
      %v634 = vadd.f32 0.0, %v633
      %v635 = vpop.f32.mrb[0].mxu0
      %636 = vmatprep.mubr.bf16.mxu0 0
      %637 = vmatmul.mubr.bf16.gmra.mrb[0].mxu0 %v547
      %v638 = vpop.f32.mrb[0].mxu0
      %v639 = vadd.f32 0.0, %v638
      %v640 = vpop.f32.mrb[0].mxu0
      %v641 = vpop.f32.mrb[0].mxu0
      %v642 = vadd.f32 0.0, %v641
      %v643 = vpop.f32.mrb[0].mxu0
      %644 = vmatprep.mubr.bf16.mxu0 0
      %645 = vmatmul.mubr.bf16.gmra.mrb[0].mxu0 %v550
      %v646 = vpop.f32.mrb[0].mxu0
      %v647 = vadd.f32 0.0, %v646
      %v648 = vpop.f32.mrb[0].mxu0
      %v649 = vpop.f32.mrb[0].mxu0
      %v650 = vadd.f32 0.0, %v649
      %v651 = vpop.f32.mrb[0].mxu0
      %652 = vdwg.mxu0
      %v658 = vunpack.c.l.b16 %v428
      %v659 = vunpack.c.l.b16 %v429
      %v660 = vunpack.c.l.b16 %v430
      %v661 = vunpack.c.l.b16 %v431
      %v662 = vunpack.c.l.b16 %v432
      %v663 = vpack.c.b16 %v659, %v658
      %v664 = vpack.c.b16 %v661, %v660
      %v665 = vpack.c.b16 %v662, %v662
      %v668 = vsel %vm527, %v418, 0
      %v670 = vsel %vm527, %v419, 0
      %v672 = vsel %vm527, %v420, 0
      %v674 = vsel %vm527, %v421, 0
      %v676 = vsel %vm527, %v423, 0
      %v678 = vsel %vm527, %v424, 0
      %v680 = vsel %vm527, %v425, 0
      %v682 = vsel %vm527, %v426, 0
      %v685 = vsel %vm552, %v665, 0
      %687 = vmatprep.subr.bf16.mxu0 0
      %688 = vmatpush1.bf16.msra.mxu0 %v663
      %689 = vmatprep.subr.bf16.mxu0 0
      %690 = vmatpush1.bf16.msra.mxu0 %v664
      %691 = vmatprep.subr.bf16.mxu0 0
      %692 = vmatpush1.bf16.msra.mxu0 %v685
      %693 = vmatprep.subr.bf16.mxu0 0
      %694 = vmatpush1.bf16.msra.mxu0 0
      %695 = vmatprep.subr.bf16.mxu0 0
      %696 = vmatpush1.bf16.msra.mxu0 0
      %697 = vmatprep.subr.bf16.mxu0 0
      %698 = vmatpush1.bf16.msra.mxu0 0
      %699 = vmatprep.subr.bf16.mxu0 0
      %700 = vmatpush1.bf16.msra.mxu0 0
      %701 = vmatprep.subr.bf16.mxu0 0
      %702 = vmatpush1.bf16.msra.mxu0 0
      %703 = vmatprep.subr.bf16.mxu0 0
      %704 = vmatpush1.bf16.msra.mxu0 0
      %705 = vmatprep.subr.bf16.mxu0 0
      %706 = vmatpush1.bf16.msra.mxu0 0
      %707 = vmatprep.subr.bf16.mxu0 0
      %708 = vmatpush1.bf16.msra.mxu0 0
      %709 = vmatprep.subr.bf16.mxu0 0
      %710 = vmatpush1.bf16.msra.mxu0 0
      %711 = vmatprep.subr.bf16.mxu0 0
      %712 = vmatpush1.bf16.msra.mxu0 0
      %713 = vmatprep.subr.bf16.mxu0 0
      %714 = vmatpush1.bf16.msra.mxu0 0
      %715 = vmatprep.subr.bf16.mxu0 0
      %716 = vmatpush1.bf16.msra.mxu0 0
      %717 = vmatprep.subr.bf16.mxu0 0
      %718 = vmatpush1.bf16.msra.mxu0 0
      %719 = vmatprep.mubr.bf16.mxu0 0
      %720 = vmatmul.mubr.bf16.gmra.mrb[0].mxu0 %v668
      %v721 = vpop.f32.mrb[0].mxu0
      %v722 = vadd.f32 %v591, %v721
      %v723 = vpop.f32.mrb[0].mxu0
      %v724 = vpop.f32.mrb[0].mxu0
      %v725 = vadd.f32 %v594, %v724
      %v726 = vpop.f32.mrb[0].mxu0
      %727 = vmatprep.mubr.bf16.mxu0 0
      %728 = vmatmul.mubr.bf16.gmra.mrb[0].mxu0 %v670
      %v729 = vpop.f32.mrb[0].mxu0
      %v730 = vadd.f32 %v599, %v729
      %v731 = vpop.f32.mrb[0].mxu0
      %v732 = vpop.f32.mrb[0].mxu0
      %v733 = vadd.f32 %v602, %v732
      %v734 = vpop.f32.mrb[0].mxu0
      %735 = vmatprep.mubr.bf16.mxu0 0
      %736 = vmatmul.mubr.bf16.gmra.mrb[0].mxu0 %v672
      %v737 = vpop.f32.mrb[0].mxu0
      %v738 = vadd.f32 %v607, %v737
      %v739 = vpop.f32.mrb[0].mxu0
      %v740 = vpop.f32.mrb[0].mxu0
      %v741 = vadd.f32 %v610, %v740
      %v742 = vpop.f32.mrb[0].mxu0
      %743 = vmatprep.mubr.bf16.mxu0 0
      %744 = vmatmul.mubr.bf16.gmra.mrb[0].mxu0 %v674
      %v745 = vpop.f32.mrb[0].mxu0
      %v746 = vadd.f32 %v615, %v745
      %v747 = vpop.f32.mrb[0].mxu0
      %v748 = vpop.f32.mrb[0].mxu0
      %v749 = vadd.f32 %v618, %v748
      %v750 = vpop.f32.mrb[0].mxu0
      %751 = vmatprep.mubr.bf16.mxu0 0
      %752 = vmatmul.mubr.bf16.gmra.mrb[0].mxu0 %v676
      %v753 = vpop.f32.mrb[0].mxu0
      %v754 = vadd.f32 %v623, %v753
      %v755 = vpop.f32.mrb[0].mxu0
      %v756 = vpop.f32.mrb[0].mxu0
      %v757 = vadd.f32 %v626, %v756
      %v758 = vpop.f32.mrb[0].mxu0
      %759 = vmatprep.mubr.bf16.mxu0 0
      %760 = vmatmul.mubr.bf16.gmra.mrb[0].mxu0 %v678
      %v761 = vpop.f32.mrb[0].mxu0
      %v762 = vadd.f32 %v631, %v761
      %v763 = vpop.f32.mrb[0].mxu0
      %v764 = vpop.f32.mrb[0].mxu0
      %v765 = vadd.f32 %v634, %v764
      %v766 = vpop.f32.mrb[0].mxu0
      %767 = vmatprep.mubr.bf16.mxu0 0
      %768 = vmatmul.mubr.bf16.gmra.mrb[0].mxu0 %v680
      %v769 = vpop.f32.mrb[0].mxu0
      %v770 = vadd.f32 %v639, %v769
      %v771 = vpop.f32.mrb[0].mxu0
      %v772 = vpop.f32.mrb[0].mxu0
      %v773 = vadd.f32 %v642, %v772
      %v774 = vpop.f32.mrb[0].mxu0
      %775 = vmatprep.mubr.bf16.mxu0 0
      %776 = vmatmul.mubr.bf16.gmra.mrb[0].mxu0 %v682
      %v777 = vpop.f32.mrb[0].mxu0
      %v778 = vadd.f32 %v647, %v777
      %v779 = vpop.f32.mrb[0].mxu0
      %v780 = vpop.f32.mrb[0].mxu0
      %v781 = vadd.f32 %v650, %v780
      %v782 = vpop.f32.mrb[0].mxu0
      %783 = vdwg.mxu0
      %vm794 = vcmask 1046528
      %v795 = vrot.slane %v418, 1
      %v796 = vrot.slane %v419, 1
      %v797 = vsel %vm794, %v795, %v796
      %v798 = vrot.slane %v420, 1
      %v799 = vsel %vm794, %v796, %v798
      %v800 = vrot.slane %v421, 1
      %v801 = vsel %vm794, %v798, %v800
      %v802 = vrot.slane %v422, 1
      %v803 = vsel %vm794, %v800, %v802
      %v804 = vrot.slane %v423, 1
      %v805 = vrot.slane %v424, 1
      %v806 = vsel %vm794, %v804, %v805
      %v807 = vrot.slane %v425, 1
      %v808 = vsel %vm794, %v805, %v807
      %v809 = vrot.slane %v426, 1
      %v810 = vsel %vm794, %v807, %v809
      %v811 = vrot.slane %v427, 1
      %v812 = vsel %vm794, %v809, %v811
      %s813 = scalar_lea.vmem %s1, 40
      %v814 = vld [vmem:[%s813] sm:$0xf]
      %v815 = vld [vmem:[%s813 + $0x4] sm:$0xf]
      %v816 = vld [vmem:[%s813 + $0x8] sm:$0xf]
      %v817 = vld [vmem:[%s813 + $0xc] sm:$0xf]
      %v818 = vld [vmem:[%s813 + $0x10] sm:$0xf]
      %v824 = vunpack.c.l.b16 %v814
      %v825 = vunpack.c.l.b16 %v815
      %v826 = vunpack.c.l.b16 %v816
      %v827 = vunpack.c.l.b16 %v817
      %v828 = vunpack.c.l.b16 %v818
      %v829 = vpack.c.b16 %v825, %v824
      %v830 = vpack.c.b16 %v827, %v826
      %v831 = vpack.c.b16 %v828, %v828
      %v835 = vsel %vm527, %v797, 0
      %v838 = vsel %vm527, %v799, 0
      %v841 = vsel %vm527, %v801, 0
      %v844 = vsel %vm527, %v803, 0
      %v847 = vsel %vm527, %v806, 0
      %v850 = vsel %vm527, %v808, 0
      %v853 = vsel %vm527, %v810, 0
      %v856 = vsel %vm527, %v812, 0
      %v859 = vsel %vm552, %v831, 0
      %861 = vmatprep.subr.bf16.mxu0 0
      %862 = vmatpush1.bf16.msra.mxu0 %v829
      %863 = vmatprep.subr.bf16.mxu0 0
      %864 = vmatpush1.bf16.msra.mxu0 %v830
      %865 = vmatprep.subr.bf16.mxu0 0
      %866 = vmatpush1.bf16.msra.mxu0 %v859
      %867 = vmatprep.subr.bf16.mxu0 0
      %868 = vmatpush1.bf16.msra.mxu0 0
      %869 = vmatprep.subr.bf16.mxu0 0
      %870 = vmatpush1.bf16.msra.mxu0 0
      %871 = vmatprep.subr.bf16.mxu0 0
      %872 = vmatpush1.bf16.msra.mxu0 0
      %873 = vmatprep.subr.bf16.mxu0 0
      %874 = vmatpush1.bf16.msra.mxu0 0
      %875 = vmatprep.subr.bf16.mxu0 0
      %876 = vmatpush1.bf16.msra.mxu0 0
      %877 = vmatprep.subr.bf16.mxu0 0
      %878 = vmatpush1.bf16.msra.mxu0 0
      %879 = vmatprep.subr.bf16.mxu0 0
      %880 = vmatpush1.bf16.msra.mxu0 0
      %881 = vmatprep.subr.bf16.mxu0 0
      %882 = vmatpush1.bf16.msra.mxu0 0
      %883 = vmatprep.subr.bf16.mxu0 0
      %884 = vmatpush1.bf16.msra.mxu0 0
      %885 = vmatprep.subr.bf16.mxu0 0
      %886 = vmatpush1.bf16.msra.mxu0 0
      %887 = vmatprep.subr.bf16.mxu0 0
      %888 = vmatpush1.bf16.msra.mxu0 0
      %889 = vmatprep.subr.bf16.mxu0 0
      %890 = vmatpush1.bf16.msra.mxu0 0
      %891 = vmatprep.subr.bf16.mxu0 0
      %892 = vmatpush1.bf16.msra.mxu0 0
      %893 = vmatprep.mubr.bf16.mxu0 0
      %894 = vmatmul.mubr.bf16.gmra.mrb[0].mxu0 %v835
      %v895 = vpop.f32.mrb[0].mxu0
      %v896 = vadd.f32 0.0, %v895
      %v897 = vpop.f32.mrb[0].mxu0
      %v898 = vpop.f32.mrb[0].mxu0
      %v899 = vadd.f32 0.0, %v898
      %v900 = vpop.f32.mrb[0].mxu0
      %901 = vmatprep.mubr.bf16.mxu0 0
      %902 = vmatmul.mubr.bf16.gmra.mrb[0].mxu0 %v838
      %v903 = vpop.f32.mrb[0].mxu0
      %v904 = vadd.f32 0.0, %v903
      %v905 = vpop.f32.mrb[0].mxu0
      %v906 = vpop.f32.mrb[0].mxu0
      %v907 = vadd.f32 0.0, %v906
      %v908 = vpop.f32.mrb[0].mxu0
      %909 = vmatprep.mubr.bf16.mxu0 0
      %910 = vmatmul.mubr.bf16.gmra.mrb[0].mxu0 %v841
      %v911 = vpop.f32.mrb[0].mxu0
      %v912 = vadd.f32 0.0, %v911
      %v913 = vpop.f32.mrb[0].mxu0
      %v914 = vpop.f32.mrb[0].mxu0
      %v915 = vadd.f32 0.0, %v914
      %v916 = vpop.f32.mrb[0].mxu0
      %917 = vmatprep.mubr.bf16.mxu0 0
      %918 = vmatmul.mubr.bf16.gmra.mrb[0].mxu0 %v844
      %v919 = vpop.f32.mrb[0].mxu0
      %v920 = vadd.f32 0.0, %v919
      %v921 = vpop.f32.mrb[0].mxu0
      %v922 = vpop.f32.mrb[0].mxu0
      %v923 = vadd.f32 0.0, %v922
      %v924 = vpop.f32.mrb[0].mxu0
      %925 = vmatprep.mubr.bf16.mxu0 0
      %926 = vmatmul.mubr.bf16.gmra.mrb[0].mxu0 %v847
      %v927 = vpop.f32.mrb[0].mxu0
      %v928 = vadd.f32 0.0, %v927
      %v929 = vpop.f32.mrb[0].mxu0
      %v930 = vpop.f32.mrb[0].mxu0
      %v931 = vadd.f32 0.0, %v930
      %v932 = vpop.f32.mrb[0].mxu0
      %933 = vmatprep.mubr.bf16.mxu0 0
      %934 = vmatmul.mubr.bf16.gmra.mrb[0].mxu0 %v850
      %v935 = vpop.f32.mrb[0].mxu0
      %v936 = vadd.f32 0.0, %v935
      %v937 = vpop.f32.mrb[0].mxu0
      %v938 = vpop.f32.mrb[0].mxu0
      %v939 = vadd.f32 0.0, %v938
      %v940 = vpop.f32.mrb[0].mxu0
      %941 = vmatprep.mubr.bf16.mxu0 0
      %942 = vmatmul.mubr.bf16.gmra.mrb[0].mxu0 %v853
      %v943 = vpop.f32.mrb[0].mxu0
      %v944 = vadd.f32 0.0, %v943
      %v945 = vpop.f32.mrb[0].mxu0
      %v946 = vpop.f32.mrb[0].mxu0
      %v947 = vadd.f32 0.0, %v946
      %v948 = vpop.f32.mrb[0].mxu0
      %949 = vmatprep.mubr.bf16.mxu0 0
      %950 = vmatmul.mubr.bf16.gmra.mrb[0].mxu0 %v856
      %v951 = vpop.f32.mrb[0].mxu0
      %v952 = vadd.f32 0.0, %v951
      %v953 = vpop.f32.mrb[0].mxu0
      %v954 = vpop.f32.mrb[0].mxu0
      %v955 = vadd.f32 0.0, %v954
      %v956 = vpop.f32.mrb[0].mxu0
      %957 = vdwg.mxu0
      %v958 = vadd.f32 %v722, %v896
      %v959 = vadd.f32 %v725, %v899
      %v960 = vadd.f32 %v730, %v904
      %v961 = vadd.f32 %v733, %v907
      %v962 = vadd.f32 %v738, %v912
      %v963 = vadd.f32 %v741, %v915
      %v964 = vadd.f32 %v746, %v920
      %v965 = vadd.f32 %v749, %v923
      %v966 = vadd.f32 %v754, %v928
      %v967 = vadd.f32 %v757, %v931
      %v968 = vadd.f32 %v762, %v936
      %v969 = vadd.f32 %v765, %v939
      %v970 = vadd.f32 %v770, %v944
      %v971 = vadd.f32 %v773, %v947
      %v972 = vadd.f32 %v778, %v952
      %v973 = vadd.f32 %v781, %v955
      %vm974 = vsmask.f32 6400
      %v975 = vrot.slane %v435, 1
      %v976 = vrot.slane %v437, 2
      %v977 = vor.u32 %v975, %v976
      %v978 = vrot.slane %v446, 1
      %v979 = vrot.slane %v442, 2
      %v980 = vor.u32 %v978, %v979
      %v981 = vsel %vm974, %v977, %v980
      %v982 = vrot.slane %v454, 1
      %v983 = vrot.slane %v450, 2
      %v984 = vor.u32 %v982, %v983
      %v985 = vsel %vm974, %v980, %v984
      %v986 = vrot.slane %v462, 1
      %v987 = vrot.slane %v458, 2
      %v988 = vor.u32 %v986, %v987
      %v989 = vsel %vm974, %v984, %v988
      %v990 = vshrl.u32 %v422, 16
      %v992 = vrot.slane %v990, 1
      %v993 = vrot.slane %v466, 2
      %v994 = vor.u32 %v992, %v993
      %v995 = vsel %vm974, %v988, %v994
      %v996 = vrot.slane %v471, 1
      %v997 = vrot.slane %v473, 2
      %v998 = vor.u32 %v996, %v997
      %v999 = vrot.slane %v482, 1
      %v1000 = vrot.slane %v478, 2
      %v1001 = vor.u32 %v999, %v1000
      %v1002 = vsel %vm974, %v998, %v1001
      %v1003 = vrot.slane %v490, 1
      %v1004 = vrot.slane %v486, 2
      %v1005 = vor.u32 %v1003, %v1004
      %v1006 = vsel %vm974, %v1001, %v1005
      %v1007 = vrot.slane %v498, 1
      %v1008 = vrot.slane %v494, 2
      %v1009 = vor.u32 %v1007, %v1008
      %v1010 = vsel %vm974, %v1005, %v1009
      %v1011 = vshrl.u32 %v427, 16
      %v1013 = vrot.slane %v1011, 1
      %v1014 = vrot.slane %v502, 2
      %v1015 = vor.u32 %v1013, %v1014
      %v1016 = vsel %vm974, %v1009, %v1015
      %s1017 = scalar_lea.vmem %s1, 60
      %v1018 = vld [vmem:[%s1017] sm:$0xf]
      %v1019 = vld [vmem:[%s1017 + $0x4] sm:$0xf]
      %v1020 = vld [vmem:[%s1017 + $0x8] sm:$0xf]
      %v1021 = vld [vmem:[%s1017 + $0xc] sm:$0xf]
      %v1022 = vld [vmem:[%s1017 + $0x10] sm:$0xf]
      %v1028 = vunpack.c.l.b16 %v1018
      %v1029 = vunpack.c.l.b16 %v1019
      %v1030 = vunpack.c.l.b16 %v1020
      %v1031 = vunpack.c.l.b16 %v1021
      %v1032 = vunpack.c.l.b16 %v1022
      %v1033 = vpack.c.b16 %v1029, %v1028
      %v1034 = vpack.c.b16 %v1031, %v1030
      %v1035 = vpack.c.b16 %v1032, %v1032
      %v1039 = vsel %vm527, %v981, 0
      %v1042 = vsel %vm527, %v985, 0
      %v1045 = vsel %vm527, %v989, 0
      %v1048 = vsel %vm527, %v995, 0
      %v1051 = vsel %vm527, %v1002, 0
      %v1054 = vsel %vm527, %v1006, 0
      %v1057 = vsel %vm527, %v1010, 0
      %v1060 = vsel %vm527, %v1016, 0
      %v1063 = vsel %vm552, %v1035, 0
      %1065 = vmatprep.subr.bf16.mxu0 0
      %1066 = vmatpush1.bf16.msra.mxu0 %v1033
      %1067 = vmatprep.subr.bf16.mxu0 0
      %1068 = vmatpush1.bf16.msra.mxu0 %v1034
      %1069 = vmatprep.subr.bf16.mxu0 0
      %1070 = vmatpush1.bf16.msra.mxu0 %v1063
      %1071 = vmatprep.subr.bf16.mxu0 0
      %1072 = vmatpush1.bf16.msra.mxu0 0
      %1073 = vmatprep.subr.bf16.mxu0 0
      %1074 = vmatpush1.bf16.msra.mxu0 0
      %1075 = vmatprep.subr.bf16.mxu0 0
      %1076 = vmatpush1.bf16.msra.mxu0 0
      %1077 = vmatprep.subr.bf16.mxu0 0
      %1078 = vmatpush1.bf16.msra.mxu0 0
      %1079 = vmatprep.subr.bf16.mxu0 0
      %1080 = vmatpush1.bf16.msra.mxu0 0
      %1081 = vmatprep.subr.bf16.mxu0 0
      %1082 = vmatpush1.bf16.msra.mxu0 0
      %1083 = vmatprep.subr.bf16.mxu0 0
      %1084 = vmatpush1.bf16.msra.mxu0 0
      %1085 = vmatprep.subr.bf16.mxu0 0
      %1086 = vmatpush1.bf16.msra.mxu0 0
      %1087 = vmatprep.subr.bf16.mxu0 0
      %1088 = vmatpush1.bf16.msra.mxu0 0
      %1089 = vmatprep.subr.bf16.mxu0 0
      %1090 = vmatpush1.bf16.msra.mxu0 0
      %1091 = vmatprep.subr.bf16.mxu0 0
      %1092 = vmatpush1.bf16.msra.mxu0 0
      %1093 = vmatprep.subr.bf16.mxu0 0
      %1094 = vmatpush1.bf16.msra.mxu0 0
      %1095 = vmatprep.subr.bf16.mxu0 0
      %1096 = vmatpush1.bf16.msra.mxu0 0
      %1097 = vmatprep.mubr.bf16.mxu0 0
      %1098 = vmatmul.mubr.bf16.gmra.mrb[0].mxu0 %v1039
      %v1099 = vpop.f32.mrb[0].mxu0
      %v1100 = vadd.f32 0.0, %v1099
      %v1101 = vpop.f32.mrb[0].mxu0
      %v1102 = vpop.f32.mrb[0].mxu0
      %v1103 = vadd.f32 0.0, %v1102
      %v1104 = vpop.f32.mrb[0].mxu0
      %1105 = vmatprep.mubr.bf16.mxu0 0
      %1106 = vmatmul.mubr.bf16.gmra.mrb[0].mxu0 %v1042
      %v1107 = vpop.f32.mrb[0].mxu0
      %v1108 = vadd.f32 0.0, %v1107
      %v1109 = vpop.f32.mrb[0].mxu0
      %v1110 = vpop.f32.mrb[0].mxu0
      %v1111 = vadd.f32 0.0, %v1110
      %v1112 = vpop.f32.mrb[0].mxu0
      %1113 = vmatprep.mubr.bf16.mxu0 0
      %1114 = vmatmul.mubr.bf16.gmra.mrb[0].mxu0 %v1045
      %v1115 = vpop.f32.mrb[0].mxu0
      %v1116 = vadd.f32 0.0, %v1115
      %v1117 = vpop.f32.mrb[0].mxu0
      %v1118 = vpop.f32.mrb[0].mxu0
      %v1119 = vadd.f32 0.0, %v1118
      %v1120 = vpop.f32.mrb[0].mxu0
      %1121 = vmatprep.mubr.bf16.mxu0 0
      %1122 = vmatmul.mubr.bf16.gmra.mrb[0].mxu0 %v1048
      %v1123 = vpop.f32.mrb[0].mxu0
      %v1124 = vadd.f32 0.0, %v1123
      %v1125 = vpop.f32.mrb[0].mxu0
      %v1126 = vpop.f32.mrb[0].mxu0
      %v1127 = vadd.f32 0.0, %v1126
      %v1128 = vpop.f32.mrb[0].mxu0
      %1129 = vmatprep.mubr.bf16.mxu0 0
      %1130 = vmatmul.mubr.bf16.gmra.mrb[0].mxu0 %v1051
      %v1131 = vpop.f32.mrb[0].mxu0
      %v1132 = vadd.f32 0.0, %v1131
      %v1133 = vpop.f32.mrb[0].mxu0
      %v1134 = vpop.f32.mrb[0].mxu0
      %v1135 = vadd.f32 0.0, %v1134
      %v1136 = vpop.f32.mrb[0].mxu0
      %1137 = vmatprep.mubr.bf16.mxu0 0
      %1138 = vmatmul.mubr.bf16.gmra.mrb[0].mxu0 %v1054
      %v1139 = vpop.f32.mrb[0].mxu0
      %v1140 = vadd.f32 0.0, %v1139
      %v1141 = vpop.f32.mrb[0].mxu0
      %v1142 = vpop.f32.mrb[0].mxu0
      %v1143 = vadd.f32 0.0, %v1142
      %v1144 = vpop.f32.mrb[0].mxu0
      %1145 = vmatprep.mubr.bf16.mxu0 0
      %1146 = vmatmul.mubr.bf16.gmra.mrb[0].mxu0 %v1057
      %v1147 = vpop.f32.mrb[0].mxu0
      %v1148 = vadd.f32 0.0, %v1147
      %v1149 = vpop.f32.mrb[0].mxu0
      %v1150 = vpop.f32.mrb[0].mxu0
      %v1151 = vadd.f32 0.0, %v1150
      %v1152 = vpop.f32.mrb[0].mxu0
      %1153 = vmatprep.mubr.bf16.mxu0 0
      %1154 = vmatmul.mubr.bf16.gmra.mrb[0].mxu0 %v1060
      %v1155 = vpop.f32.mrb[0].mxu0
      %v1156 = vadd.f32 0.0, %v1155
      %v1157 = vpop.f32.mrb[0].mxu0
      %v1158 = vpop.f32.mrb[0].mxu0
      %v1159 = vadd.f32 0.0, %v1158
      %v1160 = vpop.f32.mrb[0].mxu0
      %1161 = vdwg.mxu0
      %v1162 = vadd.f32 %v958, %v1100
      %v1163 = vadd.f32 %v959, %v1103
      %v1164 = vadd.f32 %v960, %v1108
      %v1165 = vadd.f32 %v961, %v1111
      %v1166 = vadd.f32 %v962, %v1116
      %v1167 = vadd.f32 %v963, %v1119
      %v1168 = vadd.f32 %v964, %v1124
      %v1169 = vadd.f32 %v965, %v1127
      %v1170 = vadd.f32 %v966, %v1132
      %v1171 = vadd.f32 %v967, %v1135
      %v1172 = vadd.f32 %v968, %v1140
      %v1173 = vadd.f32 %v969, %v1143
      %v1174 = vadd.f32 %v970, %v1148
      %v1175 = vadd.f32 %v971, %v1151
      %v1176 = vadd.f32 %v972, %v1156
      %v1177 = vadd.f32 %v973, %v1159
      %vm1178 = vcmask 1045504
      %v1179 = vrot.slane %v418, 2
      %v1180 = vrot.slane %v419, 2
      %v1181 = vsel %vm1178, %v1179, %v1180
      %v1182 = vrot.slane %v420, 2
      %v1183 = vsel %vm1178, %v1180, %v1182
      %v1184 = vrot.slane %v421, 2
      %v1185 = vsel %vm1178, %v1182, %v1184
      %v1186 = vrot.slane %v422, 2
      %v1187 = vsel %vm1178, %v1184, %v1186
      %v1188 = vrot.slane %v423, 2
      %v1189 = vrot.slane %v424, 2
      %v1190 = vsel %vm1178, %v1188, %v1189
      %v1191 = vrot.slane %v425, 2
      %v1192 = vsel %vm1178, %v1189, %v1191
      %v1193 = vrot.slane %v426, 2
      %v1194 = vsel %vm1178, %v1191, %v1193
      %v1195 = vrot.slane %v427, 2
      %v1196 = vsel %vm1178, %v1193, %v1195
      %s1197 = scalar_lea.vmem %s1, 80
      %v1198 = vld [vmem:[%s1197] sm:$0xf]
      %v1199 = vld [vmem:[%s1197 + $0x4] sm:$0xf]
      %v1200 = vld [vmem:[%s1197 + $0x8] sm:$0xf]
      %v1201 = vld [vmem:[%s1197 + $0xc] sm:$0xf]
      %v1202 = vld [vmem:[%s1197 + $0x10] sm:$0xf]
      %v1208 = vunpack.c.l.b16 %v1198
      %v1209 = vunpack.c.l.b16 %v1199
      %v1210 = vunpack.c.l.b16 %v1200
      %v1211 = vunpack.c.l.b16 %v1201
      %v1212 = vunpack.c.l.b16 %v1202
      %v1213 = vpack.c.b16 %v1209, %v1208
      %v1214 = vpack.c.b16 %v1211, %v1210
      %v1215 = vpack.c.b16 %v1212, %v1212
      %v1219 = vsel %vm527, %v1181, 0
      %v1222 = vsel %vm527, %v1183, 0
      %v1225 = vsel %vm527, %v1185, 0
      %v1228 = vsel %vm527, %v1187, 0
      %v1231 = vsel %vm527, %v1190, 0
      %v1234 = vsel %vm527, %v1192, 0
      %v1237 = vsel %vm527, %v1194, 0
      %v1240 = vsel %vm527, %v1196, 0
      %v1243 = vsel %vm552, %v1215, 0
      %1245 = vmatprep.subr.bf16.mxu0 0
      %1246 = vmatpush1.bf16.msra.mxu0 %v1213
      %1247 = vmatprep.subr.bf16.mxu0 0
      %1248 = vmatpush1.bf16.msra.mxu0 %v1214
      %1249 = vmatprep.subr.bf16.mxu0 0
      %1250 = vmatpush1.bf16.msra.mxu0 %v1243
      %1251 = vmatprep.subr.bf16.mxu0 0
      %1252 = vmatpush1.bf16.msra.mxu0 0
      %1253 = vmatprep.subr.bf16.mxu0 0
      %1254 = vmatpush1.bf16.msra.mxu0 0
      %1255 = vmatprep.subr.bf16.mxu0 0
      %1256 = vmatpush1.bf16.msra.mxu0 0
      %1257 = vmatprep.subr.bf16.mxu0 0
      %1258 = vmatpush1.bf16.msra.mxu0 0
      %1259 = vmatprep.subr.bf16.mxu0 0
      %1260 = vmatpush1.bf16.msra.mxu0 0
      %1261 = vmatprep.subr.bf16.mxu0 0
      %1262 = vmatpush1.bf16.msra.mxu0 0
      %1263 = vmatprep.subr.bf16.mxu0 0
      %1264 = vmatpush1.bf16.msra.mxu0 0
      %1265 = vmatprep.subr.bf16.mxu0 0
      %1266 = vmatpush1.bf16.msra.mxu0 0
      %1267 = vmatprep.subr.bf16.mxu0 0
      %1268 = vmatpush1.bf16.msra.mxu0 0
      %1269 = vmatprep.subr.bf16.mxu0 0
      %1270 = vmatpush1.bf16.msra.mxu0 0
      %1271 = vmatprep.subr.bf16.mxu0 0
      %1272 = vmatpush1.bf16.msra.mxu0 0
      %1273 = vmatprep.subr.bf16.mxu0 0
      %1274 = vmatpush1.bf16.msra.mxu0 0
      %1275 = vmatprep.subr.bf16.mxu0 0
      %1276 = vmatpush1.bf16.msra.mxu0 0
      %1277 = vmatprep.mubr.bf16.mxu0 0
      %1278 = vmatmul.mubr.bf16.gmra.mrb[0].mxu0 %v1219
      %v1279 = vpop.f32.mrb[0].mxu0
      %v1280 = vadd.f32 0.0, %v1279
      %v1281 = vpop.f32.mrb[0].mxu0
      %v1282 = vpop.f32.mrb[0].mxu0
      %v1283 = vadd.f32 0.0, %v1282
      %v1284 = vpop.f32.mrb[0].mxu0
      %1285 = vmatprep.mubr.bf16.mxu0 0
      %1286 = vmatmul.mubr.bf16.gmra.mrb[0].mxu0 %v1222
      %v1287 = vpop.f32.mrb[0].mxu0
      %v1288 = vadd.f32 0.0, %v1287
      %v1289 = vpop.f32.mrb[0].mxu0
      %v1290 = vpop.f32.mrb[0].mxu0
      %v1291 = vadd.f32 0.0, %v1290
      %v1292 = vpop.f32.mrb[0].mxu0
      %1293 = vmatprep.mubr.bf16.mxu0 0
      %1294 = vmatmul.mubr.bf16.gmra.mrb[0].mxu0 %v1225
      %v1295 = vpop.f32.mrb[0].mxu0
      %v1296 = vadd.f32 0.0, %v1295
      %v1297 = vpop.f32.mrb[0].mxu0
      %v1298 = vpop.f32.mrb[0].mxu0
      %v1299 = vadd.f32 0.0, %v1298
      %v1300 = vpop.f32.mrb[0].mxu0
      %1301 = vmatprep.mubr.bf16.mxu0 0
      %1302 = vmatmul.mubr.bf16.gmra.mrb[0].mxu0 %v1228
      %v1303 = vpop.f32.mrb[0].mxu0
      %v1304 = vadd.f32 0.0, %v1303
      %v1305 = vpop.f32.mrb[0].mxu0
      %v1306 = vpop.f32.mrb[0].mxu0
      %v1307 = vadd.f32 0.0, %v1306
      %v1308 = vpop.f32.mrb[0].mxu0
      %1309 = vmatprep.mubr.bf16.mxu0 0
      %1310 = vmatmul.mubr.bf16.gmra.mrb[0].mxu0 %v1231
      %v1311 = vpop.f32.mrb[0].mxu0
      %v1312 = vadd.f32 0.0, %v1311
      %v1313 = vpop.f32.mrb[0].mxu0
      %v1314 = vpop.f32.mrb[0].mxu0
      %v1315 = vadd.f32 0.0, %v1314
      %v1316 = vpop.f32.mrb[0].mxu0
      %1317 = vmatprep.mubr.bf16.mxu0 0
      %1318 = vmatmul.mubr.bf16.gmra.mrb[0].mxu0 %v1234
      %v1319 = vpop.f32.mrb[0].mxu0
      %v1320 = vadd.f32 0.0, %v1319
      %v1321 = vpop.f32.mrb[0].mxu0
      %v1322 = vpop.f32.mrb[0].mxu0
      %v1323 = vadd.f32 0.0, %v1322
      %v1324 = vpop.f32.mrb[0].mxu0
      %1325 = vmatprep.mubr.bf16.mxu0 0
      %1326 = vmatmul.mubr.bf16.gmra.mrb[0].mxu0 %v1237
      %v1327 = vpop.f32.mrb[0].mxu0
      %v1328 = vadd.f32 0.0, %v1327
      %v1329 = vpop.f32.mrb[0].mxu0
      %v1330 = vpop.f32.mrb[0].mxu0
      %v1331 = vadd.f32 0.0, %v1330
      %v1332 = vpop.f32.mrb[0].mxu0
      %1333 = vmatprep.mubr.bf16.mxu0 0
      %1334 = vmatmul.mubr.bf16.gmra.mrb[0].mxu0 %v1240
      %v1335 = vpop.f32.mrb[0].mxu0
      %v1336 = vadd.f32 0.0, %v1335
      %v1337 = vpop.f32.mrb[0].mxu0
      %v1338 = vpop.f32.mrb[0].mxu0
      %v1339 = vadd.f32 0.0, %v1338
      %v1340 = vpop.f32.mrb[0].mxu0
      %1341 = vdwg.mxu0
      %v1342 = vadd.f32 %v1162, %v1280
      %v1343 = vadd.f32 %v1163, %v1283
      %v1344 = vadd.f32 %v1164, %v1288
      %v1345 = vadd.f32 %v1165, %v1291
      %v1346 = vadd.f32 %v1166, %v1296
      %v1347 = vadd.f32 %v1167, %v1299
      %v1348 = vadd.f32 %v1168, %v1304
      %v1349 = vadd.f32 %v1169, %v1307
      %v1350 = vadd.f32 %v1170, %v1312
      %v1351 = vadd.f32 %v1171, %v1315
      %v1352 = vadd.f32 %v1172, %v1320
      %v1353 = vadd.f32 %v1173, %v1323
      %v1354 = vadd.f32 %v1174, %v1328
      %v1355 = vadd.f32 %v1175, %v1331
      %v1356 = vadd.f32 %v1176, %v1336
      %v1357 = vadd.f32 %v1177, %v1339
      %v1358 = vld [vmem:[%s2] sm:$0x1]
      %v1360 = vlaneseq
      %v1361 = vshrl.u32 %v1360, 7
      %v1362 = vsub.s32 0, %v1361
      %v1363 = vrot.slane %v1358, %v1362
      %v1365 = vadd.f32 %v1342, %v1363
      %v1366 = vadd.f32 %v1343, %v1363
      %v1367 = vadd.f32 %v1344, %v1363
      %v1368 = vadd.f32 %v1345, %v1363
      %v1369 = vadd.f32 %v1346, %v1363
      %v1370 = vadd.f32 %v1347, %v1363
      %v1371 = vadd.f32 %v1348, %v1363
      %v1372 = vadd.f32 %v1349, %v1363
      %v1373 = vadd.f32 %v1350, %v1363
      %v1374 = vadd.f32 %v1351, %v1363
      %v1375 = vadd.f32 %v1352, %v1363
      %v1376 = vadd.f32 %v1353, %v1363
      %v1377 = vadd.f32 %v1354, %v1363
      %v1378 = vadd.f32 %v1355, %v1363
      %v1379 = vadd.f32 %v1356, %v1363
      %v1380 = vadd.f32 %v1357, %v1363
      %v1381 = vmax.f32 %v1365, 0.0
      %v1382 = vmax.f32 %v1366, 0.0
      %v1383 = vmax.f32 %v1367, 0.0
      %v1384 = vmax.f32 %v1368, 0.0
      %v1385 = vmax.f32 %v1369, 0.0
      %v1386 = vmax.f32 %v1370, 0.0
      %v1387 = vmax.f32 %v1371, 0.0
      %v1388 = vmax.f32 %v1372, 0.0
      %v1389 = vmax.f32 %v1373, 0.0
      %v1390 = vmax.f32 %v1374, 0.0
      %v1391 = vmax.f32 %v1375, 0.0
      %v1392 = vmax.f32 %v1376, 0.0
      %v1393 = vmax.f32 %v1377, 0.0
      %v1394 = vmax.f32 %v1378, 0.0
      %v1395 = vmax.f32 %v1379, 0.0
      %v1396 = vmax.f32 %v1380, 0.0
      %1397 = vst [vmem:[#allocation2] sm:$0x1] 0
      %1398 = vst [vmem:[#allocation2 + $0x24] sm:$0x1] 0
      %1399 = vst [vmem:[#allocation2 + $0x20] sm:$0x2] 0
      %1400 = vst [vmem:[#allocation2 + $0x44] sm:$0x2] 0
      %v1401 = vpack.c.bf16 %v1382, %v1381
      %v1402 = vpack.c.bf16 %v1384, %v1383
      %v1403 = vpack.c.bf16 %v1386, %v1385
      %v1404 = vpack.c.bf16 %v1388, %v1387
      %v1405 = vpack.c.bf16 %v1390, %v1389
      %v1406 = vpack.c.bf16 %v1392, %v1391
      %v1407 = vpack.c.bf16 %v1394, %v1393
      %v1408 = vpack.c.bf16 %v1396, %v1395
      %v1417 = vunpack.c.l.b16 %v1401
      %v1418 = vunpack.c.h.b16 %v1401
      %v1419 = vunpack.c.l.b16 %v1402
      %v1420 = vunpack.c.h.b16 %v1402
      %v1421 = vunpack.c.l.b16 %v1403
      %v1422 = vunpack.c.h.b16 %v1403
      %v1423 = vunpack.c.l.b16 %v1404
      %v1424 = vunpack.c.h.b16 %v1404
      %v1425 = vunpack.c.l.b16 %v1405
      %v1426 = vunpack.c.h.b16 %v1405
      %v1427 = vunpack.c.l.b16 %v1406
      %v1428 = vunpack.c.h.b16 %v1406
      %v1429 = vunpack.c.l.b16 %v1407
      %v1430 = vunpack.c.h.b16 %v1407
      %v1431 = vunpack.c.l.b16 %v1408
      %v1432 = vunpack.c.h.b16 %v1408
      %v1433 = vpack.c.b16 %v1417, %v1417
      %v1434 = vpack.c.b16 %v1418, %v1418
      %v1435 = vpack.c.b16 %v1419, %v1419
      %v1436 = vpack.c.b16 %v1420, %v1420
      %v1437 = vpack.c.b16 %v1421, %v1421
      %v1438 = vpack.c.b16 %v1422, %v1422
      %v1439 = vpack.c.b16 %v1423, %v1423
      %v1440 = vpack.c.b16 %v1424, %v1424
      %v1441 = vpack.c.b16 %v1425, %v1425
      %v1442 = vpack.c.b16 %v1426, %v1426
      %v1443 = vpack.c.b16 %v1427, %v1427
      %v1444 = vpack.c.b16 %v1428, %v1428
      %v1445 = vpack.c.b16 %v1429, %v1429
      %v1446 = vpack.c.b16 %v1430, %v1430
      %v1447 = vpack.c.b16 %v1431, %v1431
      %v1448 = vpack.c.b16 %v1432, %v1432
      %vm1449 = vcmask 1040384
      %vm1450 = vcmask 1044484
      %vm1451 = vmor %vm1449, %vm1450
      %v1452 = vrot.slane %v1433, 7
      %v1453 = vrot.slane %v1452, 4
      %v1454 = vrot.slane %v1434, 7
      %v1455 = vsel %vm1451, %v1453, %v1454
      %v1456 = vrot.slane %v1454, 4
      %v1457 = vrot.slane %v1435, 7
      %v1458 = vsel %vm1451, %v1456, %v1457
      %v1459 = vrot.slane %v1457, 4
      %v1460 = vrot.slane %v1436, 7
      %v1461 = vsel %vm1451, %v1459, %v1460
      %v1462 = vrot.slane %v1460, 4
      %v1463 = vrot.slane %v1437, 7
      %v1464 = vsel %vm1451, %v1462, %v1463
      %v1465 = vrot.slane %v1463, 4
      %v1466 = vrot.slane %v1438, 7
      %v1467 = vsel %vm1451, %v1465, %v1466
      %v1468 = vrot.slane %v1466, 4
      %v1469 = vrot.slane %v1439, 7
      %v1470 = vsel %vm1451, %v1468, %v1469
      %v1471 = vrot.slane %v1469, 4
      %v1472 = vrot.slane %v1440, 7
      %v1473 = vsel %vm1451, %v1471, %v1472
      %v1474 = vrot.slane %v1472, 4
      %v1475 = vrot.slane %v1441, 7
      %v1476 = vrot.slane %v1475, 4
      %v1477 = vrot.slane %v1442, 7
      %v1478 = vsel %vm1451, %v1476, %v1477
      %v1479 = vrot.slane %v1477, 4
      %v1480 = vrot.slane %v1443, 7
      %v1481 = vsel %vm1451, %v1479, %v1480
      %v1482 = vrot.slane %v1480, 4
      %v1483 = vrot.slane %v1444, 7
      %v1484 = vsel %vm1451, %v1482, %v1483
      %v1485 = vrot.slane %v1483, 4
      %v1486 = vrot.slane %v1445, 7
      %v1487 = vsel %vm1451, %v1485, %v1486
      %v1488 = vrot.slane %v1486, 4
      %v1489 = vrot.slane %v1446, 7
      %v1490 = vsel %vm1451, %v1488, %v1489
      %v1491 = vrot.slane %v1489, 4
      %v1492 = vrot.slane %v1447, 7
      %v1493 = vsel %vm1451, %v1491, %v1492
      %v1494 = vrot.slane %v1492, 4
      %v1495 = vrot.slane %v1448, 7
      %v1496 = vsel %vm1451, %v1494, %v1495
      %v1497 = vrot.slane %v1495, 4
      %1516 = vst [vmem:[#allocation2] sm:$0xe] %v1452
      %1517 = vst [vmem:[#allocation2 + $0x4] sm:$0xf] %v1455
      %1518 = vst [vmem:[#allocation2 + $0x8] sm:$0xf] %v1458
      %1519 = vst [vmem:[#allocation2 + $0xc] sm:$0xf] %v1461
      %1520 = vst [vmem:[#allocation2 + $0x10] sm:$0xf] %v1464
      %1521 = vst [vmem:[#allocation2 + $0x14] sm:$0xf] %v1467
      %1522 = vst [vmem:[#allocation2 + $0x18] sm:$0xf] %v1470
      %1523 = vst [vmem:[#allocation2 + $0x1c] sm:$0xf] %v1473
      %1524 = vst [vmem:[#allocation2 + $0x20] sm:$0x1] %v1474
      %1525 = vst [vmem:[#allocation2 + $0x24] sm:$0xe] %v1475
      %1526 = vst [vmem:[#allocation2 + $0x28] sm:$0xf] %v1478
      %1527 = vst [vmem:[#allocation2 + $0x2c] sm:$0xf] %v1481
      %1528 = vst [vmem:[#allocation2 + $0x30] sm:$0xf] %v1484
      %1529 = vst [vmem:[#allocation2 + $0x34] sm:$0xf] %v1487
      %1530 = vst [vmem:[#allocation2 + $0x38] sm:$0xf] %v1490
      %1531 = vst [vmem:[#allocation2 + $0x3c] sm:$0xf] %v1493
      %1532 = vst [vmem:[#allocation2 + $0x40] sm:$0xf] %v1496
      %1533 = vst [vmem:[#allocation2 + $0x44] sm:$0x1] %v1497
      %v1534 = vld [vmem:[#allocation2] sm:$0xf]
      %v1535 = vld [vmem:[#allocation2 + $0x4] sm:$0xf]
      %v1536 = vld [vmem:[#allocation2 + $0x8] sm:$0xf]
      %v1537 = vld [vmem:[#allocation2 + $0xc] sm:$0xf]
      %v1538 = vld [vmem:[#allocation2 + $0x10] sm:$0xf]
      %v1539 = vld [vmem:[#allocation2 + $0x14] sm:$0xf]
      %v1540 = vld [vmem:[#allocation2 + $0x18] sm:$0xf]
      %v1541 = vld [vmem:[#allocation2 + $0x1c] sm:$0xf]
      %v1542 = vld [vmem:[#allocation2 + $0x20] sm:$0x1]
      %v1543 = vld [vmem:[#allocation2 + $0x24] sm:$0xf]
      %v1544 = vld [vmem:[#allocation2 + $0x28] sm:$0xf]
      %v1545 = vld [vmem:[#allocation2 + $0x2c] sm:$0xf]
      %v1546 = vld [vmem:[#allocation2 + $0x30] sm:$0xf]
      %v1547 = vld [vmem:[#allocation2 + $0x34] sm:$0xf]
      %v1548 = vld [vmem:[#allocation2 + $0x38] sm:$0xf]
      %v1549 = vld [vmem:[#allocation2 + $0x3c] sm:$0xf]
      %v1550 = vld [vmem:[#allocation2 + $0x40] sm:$0xf]
      %v1551 = vld [vmem:[#allocation2 + $0x44] sm:$0x1]
      %vm1552 = vsmask.f32 3328
      %vm1553 = vsmask.f32 7440
      %vm1554 = vmor %vm1552, %vm1553
      %v1556 = vshrl.u32 %v1534, 16
      %v1558 = vrot.slane %v1556, 4
      %v1559 = vshll.u32 %v1534, 16
      %v1561 = vrot.slane %v1559, 5
      %v1562 = vor.u32 %v1558, %v1561
      %v1563 = vrot.slane %v1562, 4
      %v1565 = vshll.u32 %v1535, 16
      %v1567 = vrot.slane %v1565, 5
      %v1568 = vsel %vm1554, %v1563, %v1567
      %v1569 = vshrl.u32 %v1535, 16
      %v1571 = vrot.slane %v1569, 4
      %v1572 = vor.u32 %v1571, %v1567
      %v1573 = vrot.slane %v1572, 4
      %v1575 = vshll.u32 %v1536, 16
      %v1577 = vrot.slane %v1575, 5
      %v1578 = vsel %vm1554, %v1573, %v1577
      %v1579 = vshrl.u32 %v1536, 16
      %v1581 = vrot.slane %v1579, 4
      %v1582 = vor.u32 %v1581, %v1577
      %v1583 = vrot.slane %v1582, 4
      %v1585 = vshll.u32 %v1537, 16
      %v1587 = vrot.slane %v1585, 5
      %v1588 = vsel %vm1554, %v1583, %v1587
      %v1589 = vshrl.u32 %v1537, 16
      %v1591 = vrot.slane %v1589, 4
      %v1592 = vor.u32 %v1591, %v1587
      %v1593 = vrot.slane %v1592, 4
      %v1595 = vshll.u32 %v1538, 16
      %v1597 = vrot.slane %v1595, 5
      %v1598 = vsel %vm1554, %v1593, %v1597
      %v1599 = vshrl.u32 %v1538, 16
      %v1601 = vrot.slane %v1599, 4
      %v1602 = vor.u32 %v1601, %v1597
      %v1603 = vrot.slane %v1602, 4
      %v1605 = vshll.u32 %v1539, 16
      %v1607 = vrot.slane %v1605, 5
      %v1608 = vsel %vm1554, %v1603, %v1607
      %v1609 = vshrl.u32 %v1539, 16
      %v1611 = vrot.slane %v1609, 4
      %v1612 = vor.u32 %v1611, %v1607
      %v1613 = vrot.slane %v1612, 4
      %v1615 = vshll.u32 %v1540, 16
      %v1617 = vrot.slane %v1615, 5
      %v1618 = vsel %vm1554, %v1613, %v1617
      %v1619 = vshrl.u32 %v1540, 16
      %v1621 = vrot.slane %v1619, 4
      %v1622 = vor.u32 %v1621, %v1617
      %v1623 = vrot.slane %v1622, 4
      %v1625 = vshll.u32 %v1541, 16
      %v1627 = vrot.slane %v1625, 5
      %v1628 = vsel %vm1554, %v1623, %v1627
      %v1629 = vshrl.u32 %v1541, 16
      %v1631 = vrot.slane %v1629, 4
      %v1632 = vor.u32 %v1631, %v1627
      %v1633 = vrot.slane %v1632, 4
      %v1635 = vshll.u32 %v1542, 16
      %v1637 = vrot.slane %v1635, 5
      %v1638 = vsel %vm1554, %v1633, %v1637
      %v1640 = vshrl.u32 %v1543, 16
      %v1642 = vrot.slane %v1640, 4
      %v1643 = vshll.u32 %v1543, 16
      %v1645 = vrot.slane %v1643, 5
      %v1646 = vor.u32 %v1642, %v1645
      %v1647 = vrot.slane %v1646, 4
      %v1649 = vshll.u32 %v1544, 16
      %v1651 = vrot.slane %v1649, 5
      %v1652 = vsel %vm1554, %v1647, %v1651
      %v1653 = vshrl.u32 %v1544, 16
      %v1655 = vrot.slane %v1653, 4
      %v1656 = vor.u32 %v1655, %v1651
      %v1657 = vrot.slane %v1656, 4
      %v1659 = vshll.u32 %v1545, 16
      %v1661 = vrot.slane %v1659, 5
      %v1662 = vsel %vm1554, %v1657, %v1661
      %v1663 = vshrl.u32 %v1545, 16
      %v1665 = vrot.slane %v1663, 4
      %v1666 = vor.u32 %v1665, %v1661
      %v1667 = vrot.slane %v1666, 4
      %v1669 = vshll.u32 %v1546, 16
      %v1671 = vrot.slane %v1669, 5
      %v1672 = vsel %vm1554, %v1667, %v1671
      %v1673 = vshrl.u32 %v1546, 16
      %v1675 = vrot.slane %v1673, 4
      %v1676 = vor.u32 %v1675, %v1671
      %v1677 = vrot.slane %v1676, 4
      %v1679 = vshll.u32 %v1547, 16
      %v1681 = vrot.slane %v1679, 5
      %v1682 = vsel %vm1554, %v1677, %v1681
      %v1683 = vshrl.u32 %v1547, 16
      %v1685 = vrot.slane %v1683, 4
      %v1686 = vor.u32 %v1685, %v1681
      %v1687 = vrot.slane %v1686, 4
      %v1689 = vshll.u32 %v1548, 16
      %v1691 = vrot.slane %v1689, 5
      %v1692 = vsel %vm1554, %v1687, %v1691
      %v1693 = vshrl.u32 %v1548, 16
      %v1695 = vrot.slane %v1693, 4
      %v1696 = vor.u32 %v1695, %v1691
      %v1697 = vrot.slane %v1696, 4
      %v1699 = vshll.u32 %v1549, 16
      %v1701 = vrot.slane %v1699, 5
      %v1702 = vsel %vm1554, %v1697, %v1701
      %v1703 = vshrl.u32 %v1549, 16
      %v1705 = vrot.slane %v1703, 4
      %v1706 = vor.u32 %v1705, %v1701
      %v1707 = vrot.slane %v1706, 4
      %v1709 = vshll.u32 %v1550, 16
      %v1711 = vrot.slane %v1709, 5
      %v1712 = vsel %vm1554, %v1707, %v1711
      %v1713 = vshrl.u32 %v1550, 16
      %v1715 = vrot.slane %v1713, 4
      %v1716 = vor.u32 %v1715, %v1711
      %v1717 = vrot.slane %v1716, 4
      %v1719 = vshll.u32 %v1551, 16
      %v1721 = vrot.slane %v1719, 5
      %v1722 = vsel %vm1554, %v1717, %v1721
      %v1723 = vld [vmem:[%s3] sm:$0xf]
      %v1724 = vld [vmem:[%s3 + $0x4] sm:$0xf]
      %v1725 = vld [vmem:[%s3 + $0x8] sm:$0xf]
      %v1726 = vld [vmem:[%s3 + $0xc] sm:$0xf]
      %v1727 = vld [vmem:[%s3 + $0x10] sm:$0xf]
      %v1728 = vld [vmem:[%s3 + $0x14] sm:$0xf]
      %v1729 = vld [vmem:[%s3 + $0x18] sm:$0xf]
      %v1730 = vld [vmem:[%s3 + $0x1c] sm:$0xf]
      %v1731 = vld [vmem:[%s3 + $0x20] sm:$0xf]
      %v1732 = vld [vmem:[%s3 + $0x24] sm:$0xf]
      %v1733 = vld [vmem:[%s3 + $0x28] sm:$0xf]
      %v1734 = vld [vmem:[%s3 + $0x2c] sm:$0xf]
      %v1735 = vld [vmem:[%s3 + $0x30] sm:$0xf]
      %v1736 = vld [vmem:[%s3 + $0x34] sm:$0xf]
      %v1737 = vld [vmem:[%s3 + $0x38] sm:$0xf]
      %v1738 = vld [vmem:[%s3 + $0x3c] sm:$0xf]
      %v1739 = vld [vmem:[#allocation2] sm:$0xe]
      %v1740 = vld [vmem:[#allocation2 + $0x24] sm:$0xe]
      %vm1759 = vcmask 1042432
      %vm1760 = vcmask 1046532
      %vm1761 = vmor %vm1759, %vm1760
      %v1762 = vrot.slane %v1739, 5
      %v1763 = vrot.slane %v1762, 4
      %v1764 = vrot.slane %v1535, 5
      %v1765 = vsel %vm1761, %v1763, %v1764
      %v1766 = vrot.slane %v1764, 4
      %v1767 = vrot.slane %v1536, 5
      %v1768 = vsel %vm1761, %v1766, %v1767
      %v1769 = vrot.slane %v1767, 4
      %v1770 = vrot.slane %v1537, 5
      %v1771 = vsel %vm1761, %v1769, %v1770
      %v1772 = vrot.slane %v1770, 4
      %v1773 = vrot.slane %v1538, 5
      %v1774 = vsel %vm1761, %v1772, %v1773
      %v1775 = vrot.slane %v1773, 4
      %v1776 = vrot.slane %v1539, 5
      %v1777 = vsel %vm1761, %v1775, %v1776
      %v1778 = vrot.slane %v1776, 4
      %v1779 = vrot.slane %v1540, 5
      %v1780 = vsel %vm1761, %v1778, %v1779
      %v1781 = vrot.slane %v1779, 4
      %v1782 = vrot.slane %v1541, 5
      %v1783 = vsel %vm1761, %v1781, %v1782
      %v1784 = vrot.slane %v1782, 4
      %v1785 = vrot.slane %v1542, 5
      %v1786 = vsel %vm1761, %v1784, %v1785
      %v1787 = vrot.slane %v1740, 5
      %v1788 = vrot.slane %v1787, 4
      %v1789 = vrot.slane %v1544, 5
      %v1790 = vsel %vm1761, %v1788, %v1789
      %v1791 = vrot.slane %v1789, 4
      %v1792 = vrot.slane %v1545, 5
      %v1793 = vsel %vm1761, %v1791, %v1792
      %v1794 = vrot.slane %v1792, 4
      %v1795 = vrot.slane %v1546, 5
      %v1796 = vsel %vm1761, %v1794, %v1795
      %v1797 = vrot.slane %v1795, 4
      %v1798 = vrot.slane %v1547, 5
      %v1799 = vsel %vm1761, %v1797, %v1798
      %v1800 = vrot.slane %v1798, 4
      %v1801 = vrot.slane %v1548, 5
      %v1802 = vsel %vm1761, %v1800, %v1801
      %v1803 = vrot.slane %v1801, 4
      %v1804 = vrot.slane %v1549, 5
      %v1805 = vsel %vm1761, %v1803, %v1804
      %v1806 = vrot.slane %v1804, 4
      %v1807 = vrot.slane %v1550, 5
      %v1808 = vsel %vm1761, %v1806, %v1807
      %v1809 = vrot.slane %v1807, 4
      %v1810 = vrot.slane %v1551, 5
      %v1811 = vsel %vm1761, %v1809, %v1810
      %s1812 = scalar_lea.vmem %s3, 64
      %v1813 = vld [vmem:[%s1812] sm:$0xf]
      %v1814 = vld [vmem:[%s1812 + $0x4] sm:$0xf]
      %v1815 = vld [vmem:[%s1812 + $0x8] sm:$0xf]
      %v1816 = vld [vmem:[%s1812 + $0xc] sm:$0xf]
      %v1817 = vld [vmem:[%s1812 + $0x10] sm:$0xf]
      %v1818 = vld [vmem:[%s1812 + $0x14] sm:$0xf]
      %v1819 = vld [vmem:[%s1812 + $0x18] sm:$0xf]
      %v1820 = vld [vmem:[%s1812 + $0x1c] sm:$0xf]
      %v1821 = vld [vmem:[%s1812 + $0x20] sm:$0xf]
      %v1822 = vld [vmem:[%s1812 + $0x24] sm:$0xf]
      %v1823 = vld [vmem:[%s1812 + $0x28] sm:$0xf]
      %v1824 = vld [vmem:[%s1812 + $0x2c] sm:$0xf]
      %v1825 = vld [vmem:[%s1812 + $0x30] sm:$0xf]
      %v1826 = vld [vmem:[%s1812 + $0x34] sm:$0xf]
      %v1827 = vld [vmem:[%s1812 + $0x38] sm:$0xf]
      %v1828 = vld [vmem:[%s1812 + $0x3c] sm:$0xf]
      %v1829 = vunpack.c.l.b16 %v1765
      %v1830 = vunpack.c.l.b16 %v1768
      %v1831 = vunpack.c.l.b16 %v1771
      %v1832 = vunpack.c.l.b16 %v1774
      %v1833 = vunpack.c.l.b16 %v1777
      %v1834 = vunpack.c.l.b16 %v1780
      %v1835 = vunpack.c.l.b16 %v1783
      %v1836 = vunpack.c.l.b16 %v1786
      %v1837 = vunpack.c.l.b16 %v1790
      %v1838 = vunpack.c.l.b16 %v1793
      %v1839 = vunpack.c.l.b16 %v1796
      %v1840 = vunpack.c.l.b16 %v1799
      %v1841 = vunpack.c.l.b16 %v1802
      %v1842 = vunpack.c.l.b16 %v1805
      %v1843 = vunpack.c.l.b16 %v1808
      %v1844 = vunpack.c.l.b16 %v1811
      %v1845 = vpack.c.b16 %v1830, %v1829
      %v1846 = vpack.c.b16 %v1832, %v1831
      %v1847 = vpack.c.b16 %v1834, %v1833
      %v1848 = vpack.c.b16 %v1836, %v1835
      %v1849 = vpack.c.b16 %v1838, %v1837
      %v1850 = vpack.c.b16 %v1840, %v1839
      %v1851 = vpack.c.b16 %v1842, %v1841
      %v1852 = vpack.c.b16 %v1844, %v1843
      %v1877 = vunpack.c.l.b16 %v1813
      %v1878 = vunpack.c.l.b16 %v1814
      %v1879 = vunpack.c.l.b16 %v1815
      %v1880 = vunpack.c.l.b16 %v1816
      %v1881 = vunpack.c.l.b16 %v1817
      %v1882 = vunpack.c.l.b16 %v1818
      %v1883 = vunpack.c.l.b16 %v1819
      %v1884 = vunpack.c.l.b16 %v1820
      %v1885 = vunpack.c.l.b16 %v1821
      %v1886 = vunpack.c.l.b16 %v1822
      %v1887 = vunpack.c.l.b16 %v1823
      %v1888 = vunpack.c.l.b16 %v1824
      %v1889 = vunpack.c.l.b16 %v1825
      %v1890 = vunpack.c.l.b16 %v1826
      %v1891 = vunpack.c.l.b16 %v1827
      %v1892 = vunpack.c.l.b16 %v1828
      %v1893 = vpack.c.b16 %v1878, %v1877
      %v1894 = vpack.c.b16 %v1880, %v1879
      %v1895 = vpack.c.b16 %v1882, %v1881
      %v1896 = vpack.c.b16 %v1884, %v1883
      %v1897 = vpack.c.b16 %v1886, %v1885
      %v1898 = vpack.c.b16 %v1888, %v1887
      %v1899 = vpack.c.b16 %v1890, %v1889
      %v1900 = vpack.c.b16 %v1892, %v1891
      %1909 = vmatprep.subr.bf16.mxu0 0
      %1910 = vmatpush1.bf16.msra.mxu0 %v1893
      %1911 = vmatprep.subr.bf16.mxu0 0
      %1912 = vmatpush1.bf16.msra.mxu0 %v1894
      %1913 = vmatprep.subr.bf16.mxu0 0
      %1914 = vmatpush1.bf16.msra.mxu0 %v1895
      %1915 = vmatprep.subr.bf16.mxu0 0
      %1916 = vmatpush1.bf16.msra.mxu0 %v1896
      %1917 = vmatprep.subr.bf16.mxu0 0
      %1918 = vmatpush1.bf16.msra.mxu0 %v1897
      %1919 = vmatprep.subr.bf16.mxu0 0
      %1920 = vmatpush1.bf16.msra.mxu0 %v1898
      %1921 = vmatprep.subr.bf16.mxu0 0
      %1922 = vmatpush1.bf16.msra.mxu0 %v1899
      %1923 = vmatprep.subr.bf16.mxu0 0
      %1924 = vmatpush1.bf16.msra.mxu0 %v1900
      %1925 = vmatprep.subr.bf16.mxu0 0
      %1926 = vmatpush1.bf16.msra.mxu0 0
      %1927 = vmatprep.subr.bf16.mxu0 0
      %1928 = vmatpush1.bf16.msra.mxu0 0
      %1929 = vmatprep.subr.bf16.mxu0 0
      %1930 = vmatpush1.bf16.msra.mxu0 0
      %1931 = vmatprep.subr.bf16.mxu0 0
      %1932 = vmatpush1.bf16.msra.mxu0 0
      %1933 = vmatprep.subr.bf16.mxu0 0
      %1934 = vmatpush1.bf16.msra.mxu0 0
      %1935 = vmatprep.subr.bf16.mxu0 0
      %1936 = vmatpush1.bf16.msra.mxu0 0
      %1937 = vmatprep.subr.bf16.mxu0 0
      %1938 = vmatpush1.bf16.msra.mxu0 0
      %1939 = vmatprep.subr.bf16.mxu0 0
      %1940 = vmatpush1.bf16.msra.mxu0 0
      %1941 = vmatprep.mubr.bf16.mxu0 0
      %1942 = vmatmul.mubr.bf16.gmra.mrb[0].mxu0 %v1845
      %v1943 = vpop.f32.mrb[0].mxu0
      %v1944 = vadd.f32 0.0, %v1943
      %v1945 = vpop.f32.mrb[0].mxu0
      %v1946 = vpop.f32.mrb[0].mxu0
      %v1947 = vadd.f32 0.0, %v1946
      %v1948 = vpop.f32.mrb[0].mxu0
      %1949 = vmatprep.mubr.bf16.mxu0 0
      %1950 = vmatmul.mubr.bf16.gmra.mrb[0].mxu0 %v1846
      %v1951 = vpop.f32.mrb[0].mxu0
      %v1952 = vadd.f32 0.0, %v1951
      %v1953 = vpop.f32.mrb[0].mxu0
      %v1954 = vpop.f32.mrb[0].mxu0
      %v1955 = vadd.f32 0.0, %v1954
      %v1956 = vpop.f32.mrb[0].mxu0
      %1957 = vmatprep.mubr.bf16.mxu0 0
      %1958 = vmatmul.mubr.bf16.gmra.mrb[0].mxu0 %v1847
      %v1959 = vpop.f32.mrb[0].mxu0
      %v1960 = vadd.f32 0.0, %v1959
      %v1961 = vpop.f32.mrb[0].mxu0
      %v1962 = vpop.f32.mrb[0].mxu0
      %v1963 = vadd.f32 0.0, %v1962
      %v1964 = vpop.f32.mrb[0].mxu0
      %1965 = vmatprep.mubr.bf16.mxu0 0
      %1966 = vmatmul.mubr.bf16.gmra.mrb[0].mxu0 %v1848
      %v1967 = vpop.f32.mrb[0].mxu0
      %v1968 = vadd.f32 0.0, %v1967
      %v1969 = vpop.f32.mrb[0].mxu0
      %v1970 = vpop.f32.mrb[0].mxu0
      %v1971 = vadd.f32 0.0, %v1970
      %v1972 = vpop.f32.mrb[0].mxu0
      %1973 = vmatprep.mubr.bf16.mxu0 0
      %1974 = vmatmul.mubr.bf16.gmra.mrb[0].mxu0 %v1849
      %v1975 = vpop.f32.mrb[0].mxu0
      %v1976 = vadd.f32 0.0, %v1975
      %v1977 = vpop.f32.mrb[0].mxu0
      %v1978 = vpop.f32.mrb[0].mxu0
      %v1979 = vadd.f32 0.0, %v1978
      %v1980 = vpop.f32.mrb[0].mxu0
      %1981 = vmatprep.mubr.bf16.mxu0 0
      %1982 = vmatmul.mubr.bf16.gmra.mrb[0].mxu0 %v1850
      %v1983 = vpop.f32.mrb[0].mxu0
      %v1984 = vadd.f32 0.0, %v1983
      %v1985 = vpop.f32.mrb[0].mxu0
      %v1986 = vpop.f32.mrb[0].mxu0
      %v1987 = vadd.f32 0.0, %v1986
      %v1988 = vpop.f32.mrb[0].mxu0
      %1989 = vmatprep.mubr.bf16.mxu0 0
      %1990 = vmatmul.mubr.bf16.gmra.mrb[0].mxu0 %v1851
      %v1991 = vpop.f32.mrb[0].mxu0
      %v1992 = vadd.f32 0.0, %v1991
      %v1993 = vpop.f32.mrb[0].mxu0
      %v1994 = vpop.f32.mrb[0].mxu0
      %v1995 = vadd.f32 0.0, %v1994
      %v1996 = vpop.f32.mrb[0].mxu0
      %1997 = vmatprep.mubr.bf16.mxu0 0
      %1998 = vmatmul.mubr.bf16.gmra.mrb[0].mxu0 %v1852
      %v1999 = vpop.f32.mrb[0].mxu0
      %v2000 = vadd.f32 0.0, %v1999
      %v2001 = vpop.f32.mrb[0].mxu0
      %v2002 = vpop.f32.mrb[0].mxu0
      %v2003 = vadd.f32 0.0, %v2002
      %v2004 = vpop.f32.mrb[0].mxu0
      %2005 = vdwg.mxu0
      %v2006 = vunpack.c.l.b16 %v1568
      %v2007 = vunpack.c.l.b16 %v1578
      %v2008 = vunpack.c.l.b16 %v1588
      %v2009 = vunpack.c.l.b16 %v1598
      %v2010 = vunpack.c.l.b16 %v1608
      %v2011 = vunpack.c.l.b16 %v1618
      %v2012 = vunpack.c.l.b16 %v1628
      %v2013 = vunpack.c.l.b16 %v1638
      %v2014 = vunpack.c.l.b16 %v1652
      %v2015 = vunpack.c.l.b16 %v1662
      %v2016 = vunpack.c.l.b16 %v1672
      %v2017 = vunpack.c.l.b16 %v1682
      %v2018 = vunpack.c.l.b16 %v1692
      %v2019 = vunpack.c.l.b16 %v1702
      %v2020 = vunpack.c.l.b16 %v1712
      %v2021 = vunpack.c.l.b16 %v1722
      %v2022 = vpack.c.b16 %v2007, %v2006
      %v2023 = vpack.c.b16 %v2009, %v2008
      %v2024 = vpack.c.b16 %v2011, %v2010
      %v2025 = vpack.c.b16 %v2013, %v2012
      %v2026 = vpack.c.b16 %v2015, %v2014
      %v2027 = vpack.c.b16 %v2017, %v2016
      %v2028 = vpack.c.b16 %v2019, %v2018
      %v2029 = vpack.c.b16 %v2021, %v2020
      %v2054 = vunpack.c.l.b16 %v1723
      %v2055 = vunpack.c.l.b16 %v1724
      %v2056 = vunpack.c.l.b16 %v1725
      %v2057 = vunpack.c.l.b16 %v1726
      %v2058 = vunpack.c.l.b16 %v1727
      %v2059 = vunpack.c.l.b16 %v1728
      %v2060 = vunpack.c.l.b16 %v1729
      %v2061 = vunpack.c.l.b16 %v1730
      %v2062 = vunpack.c.l.b16 %v1731
      %v2063 = vunpack.c.l.b16 %v1732
      %v2064 = vunpack.c.l.b16 %v1733
      %v2065 = vunpack.c.l.b16 %v1734
      %v2066 = vunpack.c.l.b16 %v1735
      %v2067 = vunpack.c.l.b16 %v1736
      %v2068 = vunpack.c.l.b16 %v1737
      %v2069 = vunpack.c.l.b16 %v1738
      %v2070 = vpack.c.b16 %v2055, %v2054
      %v2071 = vpack.c.b16 %v2057, %v2056
      %v2072 = vpack.c.b16 %v2059, %v2058
      %v2073 = vpack.c.b16 %v2061, %v2060
      %v2074 = vpack.c.b16 %v2063, %v2062
      %v2075 = vpack.c.b16 %v2065, %v2064
      %v2076 = vpack.c.b16 %v2067, %v2066
      %v2077 = vpack.c.b16 %v2069, %v2068
      %2086 = vmatprep.subr.bf16.mxu0 0
      %2087 = vmatpush1.bf16.msra.mxu0 %v2070
      %2088 = vmatprep.subr.bf16.mxu0 0
      %2089 = vmatpush1.bf16.msra.mxu0 %v2071
      %2090 = vmatprep.subr.bf16.mxu0 0
      %2091 = vmatpush1.bf16.msra.mxu0 %v2072
      %2092 = vmatprep.subr.bf16.mxu0 0
      %2093 = vmatpush1.bf16.msra.mxu0 %v2073
      %2094 = vmatprep.subr.bf16.mxu0 0
      %2095 = vmatpush1.bf16.msra.mxu0 %v2074
      %2096 = vmatprep.subr.bf16.mxu0 0
      %2097 = vmatpush1.bf16.msra.mxu0 %v2075
      %2098 = vmatprep.subr.bf16.mxu0 0
      %2099 = vmatpush1.bf16.msra.mxu0 %v2076
      %2100 = vmatprep.subr.bf16.mxu0 0
      %2101 = vmatpush1.bf16.msra.mxu0 %v2077
      %2102 = vmatprep.subr.bf16.mxu0 0
      %2103 = vmatpush1.bf16.msra.mxu0 0
      %2104 = vmatprep.subr.bf16.mxu0 0
      %2105 = vmatpush1.bf16.msra.mxu0 0
      %2106 = vmatprep.subr.bf16.mxu0 0
      %2107 = vmatpush1.bf16.msra.mxu0 0
      %2108 = vmatprep.subr.bf16.mxu0 0
      %2109 = vmatpush1.bf16.msra.mxu0 0
      %2110 = vmatprep.subr.bf16.mxu0 0
      %2111 = vmatpush1.bf16.msra.mxu0 0
      %2112 = vmatprep.subr.bf16.mxu0 0
      %2113 = vmatpush1.bf16.msra.mxu0 0
      %2114 = vmatprep.subr.bf16.mxu0 0
      %2115 = vmatpush1.bf16.msra.mxu0 0
      %2116 = vmatprep.subr.bf16.mxu0 0
      %2117 = vmatpush1.bf16.msra.mxu0 0
      %2118 = vmatprep.mubr.bf16.mxu0 0
      %2119 = vmatmul.mubr.bf16.gmra.mrb[0].mxu0 %v2022
      %v2120 = vpop.f32.mrb[0].mxu0
      %v2121 = vadd.f32 %v1944, %v2120
      %v2122 = vpop.f32.mrb[0].mxu0
      %v2123 = vpop.f32.mrb[0].mxu0
      %v2124 = vadd.f32 %v1947, %v2123
      %v2125 = vpop.f32.mrb[0].mxu0
      %2126 = vmatprep.mubr.bf16.mxu0 0
      %2127 = vmatmul.mubr.bf16.gmra.mrb[0].mxu0 %v2023
      %v2128 = vpop.f32.mrb[0].mxu0
      %v2129 = vadd.f32 %v1952, %v2128
      %v2130 = vpop.f32.mrb[0].mxu0
      %v2131 = vpop.f32.mrb[0].mxu0
      %v2132 = vadd.f32 %v1955, %v2131
      %v2133 = vpop.f32.mrb[0].mxu0
      %2134 = vmatprep.mubr.bf16.mxu0 0
      %2135 = vmatmul.mubr.bf16.gmra.mrb[0].mxu0 %v2024
      %v2136 = vpop.f32.mrb[0].mxu0
      %v2137 = vadd.f32 %v1960, %v2136
      %v2138 = vpop.f32.mrb[0].mxu0
      %v2139 = vpop.f32.mrb[0].mxu0
      %v2140 = vadd.f32 %v1963, %v2139
      %v2141 = vpop.f32.mrb[0].mxu0
      %2142 = vmatprep.mubr.bf16.mxu0 0
      %2143 = vmatmul.mubr.bf16.gmra.mrb[0].mxu0 %v2025
      %v2144 = vpop.f32.mrb[0].mxu0
      %v2145 = vadd.f32 %v1968, %v2144
      %v2146 = vpop.f32.mrb[0].mxu0
      %v2147 = vpop.f32.mrb[0].mxu0
      %v2148 = vadd.f32 %v1971, %v2147
      %v2149 = vpop.f32.mrb[0].mxu0
      %2150 = vmatprep.mubr.bf16.mxu0 0
      %2151 = vmatmul.mubr.bf16.gmra.mrb[0].mxu0 %v2026
      %v2152 = vpop.f32.mrb[0].mxu0
      %v2153 = vadd.f32 %v1976, %v2152
      %v2154 = vpop.f32.mrb[0].mxu0
      %v2155 = vpop.f32.mrb[0].mxu0
      %v2156 = vadd.f32 %v1979, %v2155
      %v2157 = vpop.f32.mrb[0].mxu0
      %2158 = vmatprep.mubr.bf16.mxu0 0
      %2159 = vmatmul.mubr.bf16.gmra.mrb[0].mxu0 %v2027
      %v2160 = vpop.f32.mrb[0].mxu0
      %v2161 = vadd.f32 %v1984, %v2160
      %v2162 = vpop.f32.mrb[0].mxu0
      %v2163 = vpop.f32.mrb[0].mxu0
      %v2164 = vadd.f32 %v1987, %v2163
      %v2165 = vpop.f32.mrb[0].mxu0
      %2166 = vmatprep.mubr.bf16.mxu0 0
      %2167 = vmatmul.mubr.bf16.gmra.mrb[0].mxu0 %v2028
      %v2168 = vpop.f32.mrb[0].mxu0
      %v2169 = vadd.f32 %v1992, %v2168
      %v2170 = vpop.f32.mrb[0].mxu0
      %v2171 = vpop.f32.mrb[0].mxu0
      %v2172 = vadd.f32 %v1995, %v2171
      %v2173 = vpop.f32.mrb[0].mxu0
      %2174 = vmatprep.mubr.bf16.mxu0 0
      %2175 = vmatmul.mubr.bf16.gmra.mrb[0].mxu0 %v2029
      %v2176 = vpop.f32.mrb[0].mxu0
      %v2177 = vadd.f32 %v2000, %v2176
      %v2178 = vpop.f32.mrb[0].mxu0
      %v2179 = vpop.f32.mrb[0].mxu0
      %v2180 = vadd.f32 %v2003, %v2179
      %v2181 = vpop.f32.mrb[0].mxu0
      %2182 = vdwg.mxu0
      %v2183 = vld [vmem:[#allocation2 + $0x20] sm:$0x3]
      %v2184 = vld [vmem:[#allocation2 + $0x44] sm:$0x3]
      %vm2185 = vsmask.f32 2304
      %vm2186 = vsmask.f32 6416
      %vm2187 = vmor %vm2185, %vm2186
      %v2189 = vshrl.u32 %v1739, 16
      %v2191 = vrot.slane %v2189, 5
      %v2192 = vshll.u32 %v1739, 16
      %v2194 = vrot.slane %v2192, 6
      %v2195 = vor.u32 %v2191, %v2194
      %v2196 = vrot.slane %v2195, 4
      %v2197 = vrot.slane %v1569, 5
      %v2198 = vrot.slane %v1565, 6
      %v2199 = vor.u32 %v2197, %v2198
      %v2200 = vsel %vm2187, %v2196, %v2199
      %v2201 = vrot.slane %v2199, 4
      %v2202 = vrot.slane %v1579, 5
      %v2203 = vrot.slane %v1575, 6
      %v2204 = vor.u32 %v2202, %v2203
      %v2205 = vsel %vm2187, %v2201, %v2204
      %v2206 = vrot.slane %v2204, 4
      %v2207 = vrot.slane %v1589, 5
      %v2208 = vrot.slane %v1585, 6
      %v2209 = vor.u32 %v2207, %v2208
      %v2210 = vsel %vm2187, %v2206, %v2209
      %v2211 = vrot.slane %v2209, 4
      %v2212 = vrot.slane %v1599, 5
      %v2213 = vrot.slane %v1595, 6
      %v2214 = vor.u32 %v2212, %v2213
      %v2215 = vsel %vm2187, %v2211, %v2214
      %v2216 = vrot.slane %v2214, 4
      %v2217 = vrot.slane %v1609, 5
      %v2218 = vrot.slane %v1605, 6
      %v2219 = vor.u32 %v2217, %v2218
      %v2220 = vsel %vm2187, %v2216, %v2219
      %v2221 = vrot.slane %v2219, 4
      %v2222 = vrot.slane %v1619, 5
      %v2223 = vrot.slane %v1615, 6
      %v2224 = vor.u32 %v2222, %v2223
      %v2225 = vsel %vm2187, %v2221, %v2224
      %v2226 = vrot.slane %v2224, 4
      %v2227 = vrot.slane %v1629, 5
      %v2228 = vrot.slane %v1625, 6
      %v2229 = vor.u32 %v2227, %v2228
      %v2230 = vsel %vm2187, %v2226, %v2229
      %v2231 = vrot.slane %v2229, 4
      %v2233 = vshrl.u32 %v2183, 16
      %v2235 = vrot.slane %v2233, 5
      %v2236 = vshll.u32 %v2183, 16
      %v2238 = vrot.slane %v2236, 6
      %v2239 = vor.u32 %v2235, %v2238
      %v2240 = vsel %vm2187, %v2231, %v2239
      %v2242 = vshrl.u32 %v1740, 16
      %v2244 = vrot.slane %v2242, 5
      %v2245 = vshll.u32 %v1740, 16
      %v2247 = vrot.slane %v2245, 6
      %v2248 = vor.u32 %v2244, %v2247
      %v2249 = vrot.slane %v2248, 4
      %v2250 = vrot.slane %v1653, 5
      %v2251 = vrot.slane %v1649, 6
      %v2252 = vor.u32 %v2250, %v2251
      %v2253 = vsel %vm2187, %v2249, %v2252
      %v2254 = vrot.slane %v2252, 4
      %v2255 = vrot.slane %v1663, 5
      %v2256 = vrot.slane %v1659, 6
      %v2257 = vor.u32 %v2255, %v2256
      %v2258 = vsel %vm2187, %v2254, %v2257
      %v2259 = vrot.slane %v2257, 4
      %v2260 = vrot.slane %v1673, 5
      %v2261 = vrot.slane %v1669, 6
      %v2262 = vor.u32 %v2260, %v2261
      %v2263 = vsel %vm2187, %v2259, %v2262
      %v2264 = vrot.slane %v2262, 4
      %v2265 = vrot.slane %v1683, 5
      %v2266 = vrot.slane %v1679, 6
      %v2267 = vor.u32 %v2265, %v2266
      %v2268 = vsel %vm2187, %v2264, %v2267
      %v2269 = vrot.slane %v2267, 4
      %v2270 = vrot.slane %v1693, 5
      %v2271 = vrot.slane %v1689, 6
      %v2272 = vor.u32 %v2270, %v2271
      %v2273 = vsel %vm2187, %v2269, %v2272
      %v2274 = vrot.slane %v2272, 4
      %v2275 = vrot.slane %v1703, 5
      %v2276 = vrot.slane %v1699, 6
      %v2277 = vor.u32 %v2275, %v2276
      %v2278 = vsel %vm2187, %v2274, %v2277
      %v2279 = vrot.slane %v2277, 4
      %v2280 = vrot.slane %v1713, 5
      %v2281 = vrot.slane %v1709, 6
      %v2282 = vor.u32 %v2280, %v2281
      %v2283 = vsel %vm2187, %v2279, %v2282
      %v2284 = vrot.slane %v2282, 4
      %v2286 = vshrl.u32 %v2184, 16
      %v2288 = vrot.slane %v2286, 5
      %v2289 = vshll.u32 %v2184, 16
      %v2291 = vrot.slane %v2289, 6
      %v2292 = vor.u32 %v2288, %v2291
      %v2293 = vsel %vm2187, %v2284, %v2292
      %s2294 = scalar_lea.vmem %s3, 128
      %v2295 = vld [vmem:[%s2294] sm:$0xf]
      %v2296 = vld [vmem:[%s2294 + $0x4] sm:$0xf]
      %v2297 = vld [vmem:[%s2294 + $0x8] sm:$0xf]
      %v2298 = vld [vmem:[%s2294 + $0xc] sm:$0xf]
      %v2299 = vld [vmem:[%s2294 + $0x10] sm:$0xf]
      %v2300 = vld [vmem:[%s2294 + $0x14] sm:$0xf]
      %v2301 = vld [vmem:[%s2294 + $0x18] sm:$0xf]
      %v2302 = vld [vmem:[%s2294 + $0x1c] sm:$0xf]
      %v2303 = vld [vmem:[%s2294 + $0x20] sm:$0xf]
      %v2304 = vld [vmem:[%s2294 + $0x24] sm:$0xf]
      %v2305 = vld [vmem:[%s2294 + $0x28] sm:$0xf]
      %v2306 = vld [vmem:[%s2294 + $0x2c] sm:$0xf]
      %v2307 = vld [vmem:[%s2294 + $0x30] sm:$0xf]
      %v2308 = vld [vmem:[%s2294 + $0x34] sm:$0xf]
      %v2309 = vld [vmem:[%s2294 + $0x38] sm:$0xf]
      %v2310 = vld [vmem:[%s2294 + $0x3c] sm:$0xf]
      %v2311 = vunpack.c.l.b16 %v2200
      %v2312 = vunpack.c.l.b16 %v2205
      %v2313 = vunpack.c.l.b16 %v2210
      %v2314 = vunpack.c.l.b16 %v2215
      %v2315 = vunpack.c.l.b16 %v2220
      %v2316 = vunpack.c.l.b16 %v2225
      %v2317 = vunpack.c.l.b16 %v2230
      %v2318 = vunpack.c.l.b16 %v2240
      %v2319 = vunpack.c.l.b16 %v2253
      %v2320 = vunpack.c.l.b16 %v2258
      %v2321 = vunpack.c.l.b16 %v2263
      %v2322 = vunpack.c.l.b16 %v2268
      %v2323 = vunpack.c.l.b16 %v2273
      %v2324 = vunpack.c.l.b16 %v2278
      %v2325 = vunpack.c.l.b16 %v2283
      %v2326 = vunpack.c.l.b16 %v2293
      %v2327 = vpack.c.b16 %v2312, %v2311
      %v2328 = vpack.c.b16 %v2314, %v2313
      %v2329 = vpack.c.b16 %v2316, %v2315
      %v2330 = vpack.c.b16 %v2318, %v2317
      %v2331 = vpack.c.b16 %v2320, %v2319
      %v2332 = vpack.c.b16 %v2322, %v2321
      %v2333 = vpack.c.b16 %v2324, %v2323
      %v2334 = vpack.c.b16 %v2326, %v2325
      %v2359 = vunpack.c.l.b16 %v2295
      %v2360 = vunpack.c.l.b16 %v2296
      %v2361 = vunpack.c.l.b16 %v2297
      %v2362 = vunpack.c.l.b16 %v2298
      %v2363 = vunpack.c.l.b16 %v2299
      %v2364 = vunpack.c.l.b16 %v2300
      %v2365 = vunpack.c.l.b16 %v2301
      %v2366 = vunpack.c.l.b16 %v2302
      %v2367 = vunpack.c.l.b16 %v2303
      %v2368 = vunpack.c.l.b16 %v2304
      %v2369 = vunpack.c.l.b16 %v2305
      %v2370 = vunpack.c.l.b16 %v2306
      %v2371 = vunpack.c.l.b16 %v2307
      %v2372 = vunpack.c.l.b16 %v2308
      %v2373 = vunpack.c.l.b16 %v2309
      %v2374 = vunpack.c.l.b16 %v2310
      %v2375 = vpack.c.b16 %v2360, %v2359
      %v2376 = vpack.c.b16 %v2362, %v2361
      %v2377 = vpack.c.b16 %v2364, %v2363
      %v2378 = vpack.c.b16 %v2366, %v2365
      %v2379 = vpack.c.b16 %v2368, %v2367
      %v2380 = vpack.c.b16 %v2370, %v2369
      %v2381 = vpack.c.b16 %v2372, %v2371
      %v2382 = vpack.c.b16 %v2374, %v2373
      %2391 = vmatprep.subr.bf16.mxu0 0
      %2392 = vmatpush1.bf16.msra.mxu0 %v2375
      %2393 = vmatprep.subr.bf16.mxu0 0
      %2394 = vmatpush1.bf16.msra.mxu0 %v2376
      %2395 = vmatprep.subr.bf16.mxu0 0
      %2396 = vmatpush1.bf16.msra.mxu0 %v2377
      %2397 = vmatprep.subr.bf16.mxu0 0
      %2398 = vmatpush1.bf16.msra.mxu0 %v2378
      %2399 = vmatprep.subr.bf16.mxu0 0
      %2400 = vmatpush1.bf16.msra.mxu0 %v2379
      %2401 = vmatprep.subr.bf16.mxu0 0
      %2402 = vmatpush1.bf16.msra.mxu0 %v2380
      %2403 = vmatprep.subr.bf16.mxu0 0
      %2404 = vmatpush1.bf16.msra.mxu0 %v2381
      %2405 = vmatprep.subr.bf16.mxu0 0
      %2406 = vmatpush1.bf16.msra.mxu0 %v2382
      %2407 = vmatprep.subr.bf16.mxu0 0
      %2408 = vmatpush1.bf16.msra.mxu0 0
      %2409 = vmatprep.subr.bf16.mxu0 0
      %2410 = vmatpush1.bf16.msra.mxu0 0
      %2411 = vmatprep.subr.bf16.mxu0 0
      %2412 = vmatpush1.bf16.msra.mxu0 0
      %2413 = vmatprep.subr.bf16.mxu0 0
      %2414 = vmatpush1.bf16.msra.mxu0 0
      %2415 = vmatprep.subr.bf16.mxu0 0
      %2416 = vmatpush1.bf16.msra.mxu0 0
      %2417 = vmatprep.subr.bf16.mxu0 0
      %2418 = vmatpush1.bf16.msra.mxu0 0
      %2419 = vmatprep.subr.bf16.mxu0 0
      %2420 = vmatpush1.bf16.msra.mxu0 0
      %2421 = vmatprep.subr.bf16.mxu0 0
      %2422 = vmatpush1.bf16.msra.mxu0 0
      %2423 = vmatprep.mubr.bf16.mxu0 0
      %2424 = vmatmul.mubr.bf16.gmra.mrb[0].mxu0 %v2327
      %v2425 = vpop.f32.mrb[0].mxu0
      %v2426 = vadd.f32 0.0, %v2425
      %v2427 = vpop.f32.mrb[0].mxu0
      %v2428 = vpop.f32.mrb[0].mxu0
      %v2429 = vadd.f32 0.0, %v2428
      %v2430 = vpop.f32.mrb[0].mxu0
      %2431 = vmatprep.mubr.bf16.mxu0 0
      %2432 = vmatmul.mubr.bf16.gmra.mrb[0].mxu0 %v2328
      %v2433 = vpop.f32.mrb[0].mxu0
      %v2434 = vadd.f32 0.0, %v2433
      %v2435 = vpop.f32.mrb[0].mxu0
      %v2436 = vpop.f32.mrb[0].mxu0
      %v2437 = vadd.f32 0.0, %v2436
      %v2438 = vpop.f32.mrb[0].mxu0
      %2439 = vmatprep.mubr.bf16.mxu0 0
      %2440 = vmatmul.mubr.bf16.gmra.mrb[0].mxu0 %v2329
      %v2441 = vpop.f32.mrb[0].mxu0
      %v2442 = vadd.f32 0.0, %v2441
      %v2443 = vpop.f32.mrb[0].mxu0
      %v2444 = vpop.f32.mrb[0].mxu0
      %v2445 = vadd.f32 0.0, %v2444
      %v2446 = vpop.f32.mrb[0].mxu0
      %2447 = vmatprep.mubr.bf16.mxu0 0
      %2448 = vmatmul.mubr.bf16.gmra.mrb[0].mxu0 %v2330
      %v2449 = vpop.f32.mrb[0].mxu0
      %v2450 = vadd.f32 0.0, %v2449
      %v2451 = vpop.f32.mrb[0].mxu0
      %v2452 = vpop.f32.mrb[0].mxu0
      %v2453 = vadd.f32 0.0, %v2452
      %v2454 = vpop.f32.mrb[0].mxu0
      %2455 = vmatprep.mubr.bf16.mxu0 0
      %2456 = vmatmul.mubr.bf16.gmra.mrb[0].mxu0 %v2331
      %v2457 = vpop.f32.mrb[0].mxu0
      %v2458 = vadd.f32 0.0, %v2457
      %v2459 = vpop.f32.mrb[0].mxu0
      %v2460 = vpop.f32.mrb[0].mxu0
      %v2461 = vadd.f32 0.0, %v2460
      %v2462 = vpop.f32.mrb[0].mxu0
      %2463 = vmatprep.mubr.bf16.mxu0 0
      %2464 = vmatmul.mubr.bf16.gmra.mrb[0].mxu0 %v2332
      %v2465 = vpop.f32.mrb[0].mxu0
      %v2466 = vadd.f32 0.0, %v2465
      %v2467 = vpop.f32.mrb[0].mxu0
      %v2468 = vpop.f32.mrb[0].mxu0
      %v2469 = vadd.f32 0.0, %v2468
      %v2470 = vpop.f32.mrb[0].mxu0
      %2471 = vmatprep.mubr.bf16.mxu0 0
      %2472 = vmatmul.mubr.bf16.gmra.mrb[0].mxu0 %v2333
      %v2473 = vpop.f32.mrb[0].mxu0
      %v2474 = vadd.f32 0.0, %v2473
      %v2475 = vpop.f32.mrb[0].mxu0
      %v2476 = vpop.f32.mrb[0].mxu0
      %v2477 = vadd.f32 0.0, %v2476
      %v2478 = vpop.f32.mrb[0].mxu0
      %2479 = vmatprep.mubr.bf16.mxu0 0
      %2480 = vmatmul.mubr.bf16.gmra.mrb[0].mxu0 %v2334
      %v2481 = vpop.f32.mrb[0].mxu0
      %v2482 = vadd.f32 0.0, %v2481
      %v2483 = vpop.f32.mrb[0].mxu0
      %v2484 = vpop.f32.mrb[0].mxu0
      %v2485 = vadd.f32 0.0, %v2484
      %v2486 = vpop.f32.mrb[0].mxu0
      %2487 = vdwg.mxu0
      %v2488 = vadd.f32 %v2121, %v2426
      %v2489 = vadd.f32 %v2124, %v2429
      %v2490 = vadd.f32 %v2129, %v2434
      %v2491 = vadd.f32 %v2132, %v2437
      %v2492 = vadd.f32 %v2137, %v2442
      %v2493 = vadd.f32 %v2140, %v2445
      %v2494 = vadd.f32 %v2145, %v2450
      %v2495 = vadd.f32 %v2148, %v2453
      %v2496 = vadd.f32 %v2153, %v2458
      %v2497 = vadd.f32 %v2156, %v2461
      %v2498 = vadd.f32 %v2161, %v2466
      %v2499 = vadd.f32 %v2164, %v2469
      %v2500 = vadd.f32 %v2169, %v2474
      %v2501 = vadd.f32 %v2172, %v2477
      %v2502 = vadd.f32 %v2177, %v2482
      %v2503 = vadd.f32 %v2180, %v2485
      %v2504 = vld [vmem:[%s4] sm:$0x1]
      %v2506 = vlaneseq
      %v2507 = vshrl.u32 %v2506, 7
      %v2508 = vsub.s32 0, %v2507
      %v2509 = vrot.slane %v2504, %v2508
      %v2511 = vadd.f32 %v2488, %v2509
      %v2512 = vadd.f32 %v2489, %v2509
      %v2513 = vadd.f32 %v2490, %v2509
      %v2514 = vadd.f32 %v2491, %v2509
      %v2515 = vadd.f32 %v2492, %v2509
      %v2516 = vadd.f32 %v2493, %v2509
      %v2517 = vadd.f32 %v2494, %v2509
      %v2518 = vadd.f32 %v2495, %v2509
      %v2519 = vadd.f32 %v2496, %v2509
      %v2520 = vadd.f32 %v2497, %v2509
      %v2521 = vadd.f32 %v2498, %v2509
      %v2522 = vadd.f32 %v2499, %v2509
      %v2523 = vadd.f32 %v2500, %v2509
      %v2524 = vadd.f32 %v2501, %v2509
      %v2525 = vadd.f32 %v2502, %v2509
      %v2526 = vadd.f32 %v2503, %v2509
      %v2527 = vmax.f32 %v2511, 0.0
      %v2528 = vmax.f32 %v2512, 0.0
      %v2529 = vmax.f32 %v2513, 0.0
      %v2530 = vmax.f32 %v2514, 0.0
      %v2531 = vmax.f32 %v2515, 0.0
      %v2532 = vmax.f32 %v2516, 0.0
      %v2533 = vmax.f32 %v2517, 0.0
      %v2534 = vmax.f32 %v2518, 0.0
      %v2535 = vmax.f32 %v2519, 0.0
      %v2536 = vmax.f32 %v2520, 0.0
      %v2537 = vmax.f32 %v2521, 0.0
      %v2538 = vmax.f32 %v2522, 0.0
      %v2539 = vmax.f32 %v2523, 0.0
      %v2540 = vmax.f32 %v2524, 0.0
      %v2541 = vmax.f32 %v2525, 0.0
      %v2542 = vmax.f32 %v2526, 0.0
      %v2543 = vpack.c.bf16 %v2528, %v2527
      %v2544 = vpack.c.bf16 %v2530, %v2529
      %v2545 = vpack.c.bf16 %v2532, %v2531
      %v2546 = vpack.c.bf16 %v2534, %v2533
      %v2547 = vpack.c.bf16 %v2536, %v2535
      %v2548 = vpack.c.bf16 %v2538, %v2537
      %v2549 = vpack.c.bf16 %v2540, %v2539
      %v2550 = vpack.c.bf16 %v2542, %v2541
      %v2551 = vld [vmem:[%s5] sm:$0xf]
      %v2552 = vld [vmem:[%s5 + $0x4] sm:$0xf]
      %v2553 = vld [vmem:[%s5 + $0x8] sm:$0xf]
      %v2554 = vld [vmem:[%s5 + $0xc] sm:$0xf]
      %v2555 = vld [vmem:[%s5 + $0x10] sm:$0xf]
      %v2556 = vld [vmem:[%s5 + $0x14] sm:$0xf]
      %v2557 = vld [vmem:[%s5 + $0x18] sm:$0xf]
      %v2558 = vld [vmem:[%s5 + $0x1c] sm:$0xf]
      %v2559 = vld [vmem:[%s5 + $0x20] sm:$0xf]
      %v2560 = vld [vmem:[%s5 + $0x24] sm:$0xf]
      %v2561 = vld [vmem:[%s5 + $0x28] sm:$0xf]
      %v2562 = vld [vmem:[%s5 + $0x2c] sm:$0xf]
      %v2563 = vld [vmem:[%s5 + $0x30] sm:$0xf]
      %v2564 = vld [vmem:[%s5 + $0x34] sm:$0xf]
      %v2565 = vld [vmem:[%s5 + $0x38] sm:$0xf]
      %v2566 = vld [vmem:[%s5 + $0x3c] sm:$0xf]
      %v2567 = vld [vmem:[%s6] sm:$0x1]
      %v2569 = vlaneseq
      %v2570 = vshrl.u32 %v2569, 7
      %v2571 = vsub.s32 0, %v2570
      %v2572 = vrot.slane %v2567, %v2571
      %v2590 = vunpack.c.l.b16 %v2551
      %v2591 = vunpack.c.l.b16 %v2552
      %v2592 = vunpack.c.l.b16 %v2553
      %v2593 = vunpack.c.l.b16 %v2554
      %v2594 = vunpack.c.l.b16 %v2555
      %v2595 = vunpack.c.l.b16 %v2556
      %v2596 = vunpack.c.l.b16 %v2557
      %v2597 = vunpack.c.l.b16 %v2558
      %v2598 = vunpack.c.l.b16 %v2559
      %v2599 = vunpack.c.l.b16 %v2560
      %v2600 = vunpack.c.l.b16 %v2561
      %v2601 = vunpack.c.l.b16 %v2562
      %v2602 = vunpack.c.l.b16 %v2563
      %v2603 = vunpack.c.l.b16 %v2564
      %v2604 = vunpack.c.l.b16 %v2565
      %v2605 = vunpack.c.l.b16 %v2566
      %v2606 = vpack.c.b16 %v2591, %v2590
      %v2607 = vpack.c.b16 %v2593, %v2592
      %v2608 = vpack.c.b16 %v2595, %v2594
      %v2609 = vpack.c.b16 %v2597, %v2596
      %v2610 = vpack.c.b16 %v2599, %v2598
      %v2611 = vpack.c.b16 %v2601, %v2600
      %v2612 = vpack.c.b16 %v2603, %v2602
      %v2613 = vpack.c.b16 %v2605, %v2604
      %2622 = vmatprep.subr.bf16.mxu0 0
      %2623 = vmatpush1.bf16.msra.mxu0 %v2606
      %2624 = vmatprep.subr.bf16.mxu0 0
      %2625 = vmatpush1.bf16.msra.mxu0 %v2607
      %2626 = vmatprep.subr.bf16.mxu0 0
      %2627 = vmatpush1.bf16.msra.mxu0 %v2608
      %2628 = vmatprep.subr.bf16.mxu0 0
      %2629 = vmatpush1.bf16.msra.mxu0 %v2609
      %2630 = vmatprep.subr.bf16.mxu0 0
      %2631 = vmatpush1.bf16.msra.mxu0 %v2610
      %2632 = vmatprep.subr.bf16.mxu0 0
      %2633 = vmatpush1.bf16.msra.mxu0 %v2611
      %2634 = vmatprep.subr.bf16.mxu0 0
      %2635 = vmatpush1.bf16.msra.mxu0 %v2612
      %2636 = vmatprep.subr.bf16.mxu0 0
      %2637 = vmatpush1.bf16.msra.mxu0 %v2613
      %2638 = vmatprep.subr.bf16.mxu0 0
      %2639 = vmatpush1.bf16.msra.mxu0 0
      %2640 = vmatprep.subr.bf16.mxu0 0
      %2641 = vmatpush1.bf16.msra.mxu0 0
      %2642 = vmatprep.subr.bf16.mxu0 0
      %2643 = vmatpush1.bf16.msra.mxu0 0
      %2644 = vmatprep.subr.bf16.mxu0 0
      %2645 = vmatpush1.bf16.msra.mxu0 0
      %2646 = vmatprep.subr.bf16.mxu0 0
      %2647 = vmatpush1.bf16.msra.mxu0 0
      %2648 = vmatprep.subr.bf16.mxu0 0
      %2649 = vmatpush1.bf16.msra.mxu0 0
      %2650 = vmatprep.subr.bf16.mxu0 0
      %2651 = vmatpush1.bf16.msra.mxu0 0
      %2652 = vmatprep.subr.bf16.mxu0 0
      %2653 = vmatpush1.bf16.msra.mxu0 0
      %2654 = vmatprep.mubr.bf16.mxu0 0
      %2655 = vmatmul.mubr.bf16.gmra.mrb[0].mxu0 %v2543
      %v2656 = vpop.f32.mrb[0].mxu0
      %v2657 = vadd.f32 %v2572, %v2656
      %v2658 = vpop.f32.mrb[0].mxu0
      %v2659 = vpop.f32.mrb[0].mxu0
      %v2660 = vadd.f32 %v2572, %v2659
      %v2661 = vpop.f32.mrb[0].mxu0
      %2662 = vmatprep.mubr.bf16.mxu0 0
      %2663 = vmatmul.mubr.bf16.gmra.mrb[0].mxu0 %v2544
      %v2664 = vpop.f32.mrb[0].mxu0
      %v2665 = vadd.f32 %v2572, %v2664
      %v2666 = vpop.f32.mrb[0].mxu0
      %v2667 = vpop.f32.mrb[0].mxu0
      %v2668 = vadd.f32 %v2572, %v2667
      %v2669 = vpop.f32.mrb[0].mxu0
      %2670 = vmatprep.mubr.bf16.mxu0 0
      %2671 = vmatmul.mubr.bf16.gmra.mrb[0].mxu0 %v2545
      %v2672 = vpop.f32.mrb[0].mxu0
      %v2673 = vadd.f32 %v2572, %v2672
      %v2674 = vpop.f32.mrb[0].mxu0
      %v2675 = vpop.f32.mrb[0].mxu0
      %v2676 = vadd.f32 %v2572, %v2675
      %v2677 = vpop.f32.mrb[0].mxu0
      %2678 = vmatprep.mubr.bf16.mxu0 0
      %2679 = vmatmul.mubr.bf16.gmra.mrb[0].mxu0 %v2546
      %v2680 = vpop.f32.mrb[0].mxu0
      %v2681 = vadd.f32 %v2572, %v2680
      %v2682 = vpop.f32.mrb[0].mxu0
      %v2683 = vpop.f32.mrb[0].mxu0
      %v2684 = vadd.f32 %v2572, %v2683
      %v2685 = vpop.f32.mrb[0].mxu0
      %2686 = vmatprep.mubr.bf16.mxu0 0
      %2687 = vmatmul.mubr.bf16.gmra.mrb[0].mxu0 %v2547
      %v2688 = vpop.f32.mrb[0].mxu0
      %v2689 = vadd.f32 %v2572, %v2688
      %v2690 = vpop.f32.mrb[0].mxu0
      %v2691 = vpop.f32.mrb[0].mxu0
      %v2692 = vadd.f32 %v2572, %v2691
      %v2693 = vpop.f32.mrb[0].mxu0
      %2694 = vmatprep.mubr.bf16.mxu0 0
      %2695 = vmatmul.mubr.bf16.gmra.mrb[0].mxu0 %v2548
      %v2696 = vpop.f32.mrb[0].mxu0
      %v2697 = vadd.f32 %v2572, %v2696
      %v2698 = vpop.f32.mrb[0].mxu0
      %v2699 = vpop.f32.mrb[0].mxu0
      %v2700 = vadd.f32 %v2572, %v2699
      %v2701 = vpop.f32.mrb[0].mxu0
      %2702 = vmatprep.mubr.bf16.mxu0 0
      %2703 = vmatmul.mubr.bf16.gmra.mrb[0].mxu0 %v2549
      %v2704 = vpop.f32.mrb[0].mxu0
      %v2705 = vadd.f32 %v2572, %v2704
      %v2706 = vpop.f32.mrb[0].mxu0
      %v2707 = vpop.f32.mrb[0].mxu0
      %v2708 = vadd.f32 %v2572, %v2707
      %v2709 = vpop.f32.mrb[0].mxu0
      %2710 = vmatprep.mubr.bf16.mxu0 0
      %2711 = vmatmul.mubr.bf16.gmra.mrb[0].mxu0 %v2550
      %v2712 = vpop.f32.mrb[0].mxu0
      %v2713 = vadd.f32 %v2572, %v2712
      %v2714 = vpop.f32.mrb[0].mxu0
      %v2715 = vpop.f32.mrb[0].mxu0
      %v2716 = vadd.f32 %v2572, %v2715
      %v2717 = vpop.f32.mrb[0].mxu0
      %2718 = vdwg.mxu0
      %2719 = vst [vmem:[%s279] sm:$0xff] %v2657
      %2720 = vst [vmem:[%s279 + $0x8] sm:$0xff] %v2660
      %2721 = vst [vmem:[%s279 + $0x10] sm:$0xff] %v2665
      %2722 = vst [vmem:[%s279 + $0x18] sm:$0xff] %v2668
      %2723 = vst [vmem:[%s279 + $0x20] sm:$0xff] %v2673
      %2724 = vst [vmem:[%s279 + $0x28] sm:$0xff] %v2676
      %2725 = vst [vmem:[%s279 + $0x30] sm:$0xff] %v2681
      %2726 = vst [vmem:[%s279 + $0x38] sm:$0xff] %v2684
      %2727 = vst [vmem:[%s279 + $0x40] sm:$0xff] %v2689
      %2728 = vst [vmem:[%s279 + $0x48] sm:$0xff] %v2692
      %2729 = vst [vmem:[%s279 + $0x50] sm:$0xff] %v2697
      %2730 = vst [vmem:[%s279 + $0x58] sm:$0xff] %v2700
      %2731 = vst [vmem:[%s279 + $0x60] sm:$0xff] %v2705
      %2732 = vst [vmem:[%s279 + $0x68] sm:$0xff] %v2708
      %2733 = vst [vmem:[%s279 + $0x70] sm:$0xff] %v2713
      %2734 = vst [vmem:[%s279 + $0x78] sm:$0xff] %v2716
      %s2735 = smul.u32 2, %s18
      %p2736 = scmp.lt.s32.totalorder %s2735, 3
      %s2737 = scalar_select %p2736, %s2735, 3
      %s2738 = smul.addr %s2737, 8
      %s2739 = smul.addr %s2738, 8
      %s2740 = scalar_lea.vmem %s7, %s2739
      // Predicated region
      $region49: #{cnn_forward.1} parent=47 // pred_check
        %p2741 = pneg %p188
      $region50: #{cnn_forward.1} parent=47 // pred_check_branch
        %2743 = sbr.rel (%p2741) target = $region52
      $region51: #{cnn_forward.1} parent=47 // pred_region
        %s2744 = smul.u32 2, %s18
      $region52: #{cnn_forward.1} parent=47 // pred_fallthru
        _
    $region48: #{cnn_forward.1} parent=5 // pred_fallthru
      _
    %p2745 = scmp.le.s32.totalorder 2, %s13
    // Predicated region
    $region53: #{cnn_forward.1} parent=5 // pred_check
      %p2746 = pneg %p2745
    $region54: #{cnn_forward.1} parent=5 // pred_check_branch
      %2748 = sbr.rel (%p2746) target = $region56
    $region55: #{cnn_forward.1} parent=5 // pred_region
      %s2749 = ssub.s32 %s13, 2
      // Predicated region
      $region57: #{cnn_forward.1} parent=55 // pred_check
        %p2750 = pneg %p194
      $region58: #{cnn_forward.1} parent=55 // pred_check_branch
        %2752 = sbr.rel (%p2750) target = $region60
      $region59: #{cnn_forward.1} parent=55 // pred_region
        %s2753 = smul.u32 2, %s19
        %p2754 = scmp.lt.s32.totalorder %s2753, 3
        %s2755 = scalar_select %p2754, %s2753, 3
        %s2756 = smul.addr %s2755, 8
        %s2757 = smul.addr %s2756, 8
        %s2758 = scalar_lea.vmem %s7, %s2757
      $region60: #{cnn_forward.1} parent=55 // pred_fallthru
        _
    $region56: #{cnn_forward.1} parent=5 // pred_fallthru
      _
  $region6: #{cnn_forward.1} parent=0 // loop_footer
    %s17 = sadd.s32 1, %s13
  $region7: #{cnn_forward.1} parent=0 // loop_footer_branch
    %12 = sbr.rel target = $region3
  $region8: #{cnn_forward.1} parent=0 // loop_exit
    _

</llo_original>
